<compile_context>
chip_gen: v6e
topology: v6e:2x2x1
jax: 0.10.0
libtpu: 0.0.40
codegen_flags: <defaults>
</compile_context>

<pallas_src>
import jax
import jax.numpy as jnp
from jax.experimental import pallas as pl
from jax.experimental.pallas import tpu as pltpu

# ---- synthetic config (matches ExpectileDQNNet.__init__ shape logic) ----
INPUT_DIM = 16
ACTION_DIM = 4
NUM_EXPECTILES = 8
HIDDEN = 24                        # layer1 output width (hard-coded 24 in the module)
BATCH_SIZE = 16                    # must be divisible by NUM_EXPECTILES for .view(-1, A, E)
EXPECTILE_MEAN_IDX = NUM_EXPECTILES // 2


# -------------------- fused Pallas kernel --------------------

def expectile_dqn_kernel(x_ref, w1_ref, b1_ref, w2_ref, b2_ref, y_ref, opt_ref):
    """relu(l2(relu(l1(x)))) + mean-expectile argmax + expectile gather, fused.

    The row-major regrouping implied by torch's .view(-1, A, E) is expressed
    with small one-hot selection matmuls (iota + compare + jnp.dot), avoiding
    in-kernel reshape / concatenate / strided-slice ops entirely.
    """
    f32 = jnp.float32
    A, E, mid = ACTION_DIM, NUM_EXPECTILES, EXPECTILE_MEAN_IDX
    AE = A * E

    # ---- MLP hot path (MXU + VPU); biases broadcast as (1, H)/(1, A) rows ----
    h = jnp.dot(x_ref[...], w1_ref[...], preferred_element_type=f32) + b1_ref[...]
    h = jnp.maximum(h, 0.0)
    y = jnp.dot(h, w2_ref[...], preferred_element_type=f32) + b2_ref[...]
    y = jnp.maximum(y, 0.0)                                   # (B, A)
    y_ref[...] = y

    B = y.shape[0]
    bp = B // E                                               # groups after .view(-1, A, E)

    # ---- regroup rows of y into x3_2d[b, a*E + e] == y.flatten()[b*A*E + a*E + e] ----
    b_iota = jax.lax.broadcasted_iota(jnp.int32, (bp, B), 0)
    r_iota = jax.lax.broadcasted_iota(jnp.int32, (bp, B), 1)
    c_iota = jax.lax.broadcasted_iota(jnp.int32, (A, AE), 0)
    k_iota = jax.lax.broadcasted_iota(jnp.int32, (A, AE), 1)

    x3_2d = jnp.zeros((bp, AE), f32)
    for j in range(E):                                        # static; E is small
        row_sel = (r_iota == b_iota * E + j).astype(f32)      # (bp, B): picks y row b*E + j
        col_put = (k_iota == c_iota + j * A).astype(f32)      # (A, AE): places it at lanes j*A .. j*A+A-1
        x3_2d = x3_2d + jnp.dot(
            jnp.dot(row_sel, y, preferred_element_type=f32),
            col_put, preferred_element_type=f32)

    # ---- action_values = x3[:, :, mid]  (exact one-hot gather, no rounding) ----
    val_sel = (jax.lax.broadcasted_iota(jnp.int32, (AE, A), 0) ==
               jax.lax.broadcasted_iota(jnp.int32, (AE, A), 1) * E + mid).astype(f32)
    vals = jnp.dot(x3_2d, val_sel, preferred_element_type=f32)            # (bp, A)

    # argmax over actions, first-index tie-breaking (matches torch.argmax)
    a_iota = jax.lax.broadcasted_iota(jnp.int32, (bp, A), 1)
    mx = jnp.max(vals, axis=1, keepdims=True)
    action = jnp.min(jnp.where(vals == mx, a_iota, A), axis=1, keepdims=True)  # (bp, 1)
    onehot = (a_iota == action).astype(f32)                                    # (bp, A)

    # ---- gather the chosen action's expectiles: opt[b] = x3_2d[b, a*E : a*E+E] ----
    opt = jnp.zeros((bp, E), f32)
    for a in range(A):                                        # static; A is small
        opt = opt + onehot[:, a:a + 1] * jax.lax.slice_in_dim(x3_2d, a * E, (a + 1) * E, axis=1)
    opt_ref[...] = opt


# -------------------- wrapper --------------------

def expectile_dqn_forward(x, w1, b1, w2, b2):
    B = x.shape[0]
    bp = (B * ACTION_DIM) // (ACTION_DIM * NUM_EXPECTILES)

    y, opt = pl.pallas_call(
        expectile_dqn_kernel,
        # No grid: single invocation, whole arrays resident in VMEM.
        in_specs=[pl.BlockSpec(memory_space=pltpu.MemorySpace.VMEM)] * 5,
        out_specs=(pl.BlockSpec(memory_space=pltpu.MemorySpace.VMEM),
                   pl.BlockSpec(memory_space=pltpu.MemorySpace.VMEM)),
        out_shape=(jax.ShapeDtypeStruct((B, ACTION_DIM), jnp.float32),
                   jax.ShapeDtypeStruct((bp, NUM_EXPECTILES), jnp.float32)),
    )(x, w1, b1, w2, b2)

    # Exact equivalent of torch .view(-1, action_dim, num_expectiles):
    # a free metadata reshape in XLA, never materialized inside the kernel.
    x3 = y.reshape(bp, ACTION_DIM, NUM_EXPECTILES)
    return x3, opt


# -------------------- reference (pure JAX) --------------------

def reference_forward(x, w1, b1, w2, b2):
    h = jax.nn.relu(x @ w1 + b1)
    y = jax.nn.relu(h @ w2 + b2)
    x3 = y.reshape(-1, ACTION_DIM, NUM_EXPECTILES)
    vals = x3[:, :, EXPECTILE_MEAN_IDX]
    action = jnp.argmax(vals, axis=1)
    opt = x3[jnp.arange(x3.shape[0]), action, :]
    return x3, opt


if __name__ == "__main__":
    key = jax.random.PRNGKey(0)
    kx, k1, k2, k3, k4 = jax.random.split(key, 5)

    # deterministic parameter init (uniform +/- 1/sqrt(fan_in), like torch defaults)
    lim1 = 1.0 / jnp.sqrt(INPUT_DIM)
    lim2 = 1.0 / jnp.sqrt(HIDDEN)
    w1 = jax.random.uniform(k1, (INPUT_DIM, HIDDEN), jnp.float32, -lim1, lim1)
    b1 = jax.random.uniform(k2, (1, HIDDEN), jnp.float32, -lim1, lim1)
    w2 = jax.random.uniform(k3, (HIDDEN, ACTION_DIM), jnp.float32, -lim2, lim2)
    b2 = jax.random.uniform(k4, (1, ACTION_DIM), jnp.float32, -lim2, lim2)

    x = jax.random.normal(kx, (BATCH_SIZE, INPUT_DIM), jnp.float32)

    x3, opt = jax.jit(expectile_dqn_forward)(x, w1, b1, w2, b2)
    jax.block_until_ready((x3, opt))

    x3_ref, opt_ref = reference_forward(x, w1, b1, w2, b2)
    assert x3.shape == (BATCH_SIZE // NUM_EXPECTILES, ACTION_DIM, NUM_EXPECTILES)
    assert opt.shape == (BATCH_SIZE // NUM_EXPECTILES, NUM_EXPECTILES)
    assert jnp.allclose(x3, x3_ref, atol=1e-5, rtol=1e-5)
    assert jnp.allclose(opt, opt_ref, atol=1e-5, rtol=1e-5)

    print("KERNEL_OK")
</pallas_src>

<mosaic_0001>
module attributes {stable_mosaic.version = 11 : i64} {
  func.func @expectile_dqn_kernel(%arg0: memref<16x16xf32, #tpu.memory_space<vmem>>, %arg1: memref<16x24xf32, #tpu.memory_space<vmem>>, %arg2: memref<1x24xf32, #tpu.memory_space<vmem>>, %arg3: memref<24x4xf32, #tpu.memory_space<vmem>>, %arg4: memref<1x4xf32, #tpu.memory_space<vmem>>, %arg5: memref<16x4xf32, #tpu.memory_space<vmem>>, %arg6: memref<2x8xf32, #tpu.memory_space<vmem>>) attributes {dimension_semantics = [], scalar_prefetch = 0 : i64, scratch_operands = 0 : i64, tpu.core_type = #tpu.core_type<tc>} {
    %c0 = arith.constant 0 : index
    %c0_0 = arith.constant 0 : index
    %0 = vector.load %arg0[%c0, %c0_0] : memref<16x16xf32, #tpu.memory_space<vmem>>, vector<16x16xf32>
    %c0_1 = arith.constant 0 : index
    %c0_2 = arith.constant 0 : index
    %1 = vector.load %arg1[%c0_1, %c0_2] : memref<16x24xf32, #tpu.memory_space<vmem>>, vector<16x24xf32>
    %cst = arith.constant dense<0.000000e+00> : vector<16x24xf32>
    %2 = tpu.matmul %0, %1, %cst {dimension_numbers = #tpu.dot_dimension_numbers<[1], [0], [0], [1], [0, 0, 1, 1], [], []>} : vector<16x16xf32>, vector<16x24xf32>, vector<16x24xf32> -> vector<16x24xf32>
    %c0_3 = arith.constant 0 : index
    %c0_4 = arith.constant 0 : index
    %3 = vector.load %arg2[%c0_3, %c0_4] : memref<1x24xf32, #tpu.memory_space<vmem>>, vector<1x24xf32>
    %4 = vector.broadcast %3 : vector<1x24xf32> to vector<16x24xf32>
    %5 = arith.addf %2, %4 : vector<16x24xf32>
    %cst_5 = arith.constant 0.000000e+00 : f32
    %6 = vector.broadcast %cst_5 : f32 to vector<16x24xf32>
    %7 = arith.maximumf %5, %6 : vector<16x24xf32>
    %c0_6 = arith.constant 0 : index
    %c0_7 = arith.constant 0 : index
    %8 = vector.load %arg3[%c0_6, %c0_7] : memref<24x4xf32, #tpu.memory_space<vmem>>, vector<24x4xf32>
    %cst_8 = arith.constant dense<0.000000e+00> : vector<16x4xf32>
    %9 = tpu.matmul %7, %8, %cst_8 {dimension_numbers = #tpu.dot_dimension_numbers<[1], [0], [0], [1], [0, 0, 1, 1], [], []>} : vector<16x24xf32>, vector<24x4xf32>, vector<16x4xf32> -> vector<16x4xf32>
    %c0_9 = arith.constant 0 : index
    %c0_10 = arith.constant 0 : index
    %10 = vector.load %arg4[%c0_9, %c0_10] : memref<1x4xf32, #tpu.memory_space<vmem>>, vector<1x4xf32>
    %11 = vector.broadcast %10 : vector<1x4xf32> to vector<16x4xf32>
    %12 = arith.addf %9, %11 : vector<16x4xf32>
    %cst_11 = arith.constant 0.000000e+00 : f32
    %13 = vector.broadcast %cst_11 : f32 to vector<16x4xf32>
    %14 = arith.maximumf %12, %13 : vector<16x4xf32>
    %c0_12 = arith.constant 0 : index
    %c0_13 = arith.constant 0 : index
    %15 = vector.load %arg5[%c0_12, %c0_13] : memref<16x4xf32, #tpu.memory_space<vmem>>, vector<16x4xf32>
    tpu.vector_store %arg5[%c0_12, %c0_13], %14 {strides = array<i32>} : memref<16x4xf32, #tpu.memory_space<vmem>>, vector<16x4xf32>,
    %16 = tpu.iota {dimensions = array<i32: 0>} : vector<2x16xi32>
    %17 = tpu.iota {dimensions = array<i32: 1>} : vector<2x16xi32>
    %18 = tpu.iota {dimensions = array<i32: 0>} : vector<4x32xi32>
    %19 = tpu.iota {dimensions = array<i32: 1>} : vector<4x32xi32>
    %cst_14 = arith.constant 0.000000e+00 : f32
    %20 = vector.broadcast %cst_14 : f32 to vector<2x32xf32>
    %c8_i32 = arith.constant 8 : i32
    %21 = vector.broadcast %c8_i32 : i32 to vector<2x16xi32>
    %22 = arith.muli %16, %21 : vector<2x16xi32>
    %c0_i32 = arith.constant 0 : i32
    %23 = vector.broadcast %c0_i32 : i32 to vector<2x16xi32>
    %24 = arith.addi %22, %23 : vector<2x16xi32>
    %25 = arith.cmpi eq, %17, %24 : vector<2x16xi32>
    %26 = arith.extui %25 : vector<2x16xi1> to vector<2x16xi32>
    %27 = arith.sitofp %26 : vector<2x16xi32> to vector<2x16xf32>
    %c0_i32_15 = arith.constant 0 : i32
    %28 = vector.broadcast %c0_i32_15 : i32 to vector<4x32xi32>
    %29 = arith.addi %18, %28 : vector<4x32xi32>
    %30 = arith.cmpi eq, %19, %29 : vector<4x32xi32>
    %31 = arith.extui %30 : vector<4x32xi1> to vector<4x32xi32>
    %32 = arith.sitofp %31 : vector<4x32xi32> to vector<4x32xf32>
    %cst_16 = arith.constant dense<0.000000e+00> : vector<2x4xf32>
    %33 = tpu.matmul %27, %14, %cst_16 {dimension_numbers = #tpu.dot_dimension_numbers<[1], [0], [0], [1], [0, 0, 1, 1], [], []>} : vector<2x16xf32>, vector<16x4xf32>, vector<2x4xf32> -> vector<2x4xf32>
    %cst_17 = arith.constant dense<0.000000e+00> : vector<2x32xf32>
    %34 = tpu.matmul %33, %32, %cst_17 {dimension_numbers = #tpu.dot_dimension_numbers<[1], [0], [0], [1], [0, 0, 1, 1], [], []>} : vector<2x4xf32>, vector<4x32xf32>, vector<2x32xf32> -> vector<2x32xf32>
    %35 = arith.addf %20, %34 : vector<2x32xf32>
    %c8_i32_18 = arith.constant 8 : i32
    %36 = vector.broadcast %c8_i32_18 : i32 to vector<2x16xi32>
    %37 = arith.muli %16, %36 : vector<2x16xi32>
    %c1_i32 = arith.constant 1 : i32
    %38 = vector.broadcast %c1_i32 : i32 to vector<2x16xi32>
    %39 = arith.addi %37, %38 : vector<2x16xi32>
    %40 = arith.cmpi eq, %17, %39 : vector<2x16xi32>
    %41 = arith.extui %40 : vector<2x16xi1> to vector<2x16xi32>
    %42 = arith.sitofp %41 : vector<2x16xi32> to vector<2x16xf32>
    %c4_i32 = arith.constant 4 : i32
    %43 = vector.broadcast %c4_i32 : i32 to vector<4x32xi32>
    %44 = arith.addi %18, %43 : vector<4x32xi32>
    %45 = arith.cmpi eq, %19, %44 : vector<4x32xi32>
    %46 = arith.extui %45 : vector<4x32xi1> to vector<4x32xi32>
    %47 = arith.sitofp %46 : vector<4x32xi32> to vector<4x32xf32>
    %cst_19 = arith.constant dense<0.000000e+00> : vector<2x4xf32>
    %48 = tpu.matmul %42, %14, %cst_19 {dimension_numbers = #tpu.dot_dimension_numbers<[1], [0], [0], [1], [0, 0, 1, 1], [], []>} : vector<2x16xf32>, vector<16x4xf32>, vector<2x4xf32> -> vector<2x4xf32>
    %cst_20 = arith.constant dense<0.000000e+00> : vector<2x32xf32>
    %49 = tpu.matmul %48, %47, %cst_20 {dimension_numbers = #tpu.dot_dimension_numbers<[1], [0], [0], [1], [0, 0, 1, 1], [], []>} : vector<2x4xf32>, vector<4x32xf32>, vector<2x32xf32> -> vector<2x32xf32>
    %50 = arith.addf %35, %49 : vector<2x32xf32>
    %c8_i32_21 = arith.constant 8 : i32
    %51 = vector.broadcast %c8_i32_21 : i32 to vector<2x16xi32>
    %52 = arith.muli %16, %51 : vector<2x16xi32>
    %c2_i32 = arith.constant 2 : i32
    %53 = vector.broadcast %c2_i32 : i32 to vector<2x16xi32>
    %54 = arith.addi %52, %53 : vector<2x16xi32>
    %55 = arith.cmpi eq, %17, %54 : vector<2x16xi32>
    %56 = arith.extui %55 : vector<2x16xi1> to vector<2x16xi32>
    %57 = arith.sitofp %56 : vector<2x16xi32> to vector<2x16xf32>
    %c8_i32_22 = arith.constant 8 : i32
    %58 = vector.broadcast %c8_i32_22 : i32 to vector<4x32xi32>
    %59 = arith.addi %18, %58 : vector<4x32xi32>
    %60 = arith.cmpi eq, %19, %59 : vector<4x32xi32>
    %61 = arith.extui %60 : vector<4x32xi1> to vector<4x32xi32>
    %62 = arith.sitofp %61 : vector<4x32xi32> to vector<4x32xf32>
    %cst_23 = arith.constant dense<0.000000e+00> : vector<2x4xf32>
    %63 = tpu.matmul %57, %14, %cst_23 {dimension_numbers = #tpu.dot_dimension_numbers<[1], [0], [0], [1], [0, 0, 1, 1], [], []>} : vector<2x16xf32>, vector<16x4xf32>, vector<2x4xf32> -> vector<2x4xf32>
    %cst_24 = arith.constant dense<0.000000e+00> : vector<2x32xf32>
    %64 = tpu.matmul %63, %62, %cst_24 {dimension_numbers = #tpu.dot_dimension_numbers<[1], [0], [0], [1], [0, 0, 1, 1], [], []>} : vector<2x4xf32>, vector<4x32xf32>, vector<2x32xf32> -> vector<2x32xf32>
    %65 = arith.addf %50, %64 : vector<2x32xf32>
    %c8_i32_25 = arith.constant 8 : i32
    %66 = vector.broadcast %c8_i32_25 : i32 to vector<2x16xi32>
    %67 = arith.muli %16, %66 : vector<2x16xi32>
    %c3_i32 = arith.constant 3 : i32
    %68 = vector.broadcast %c3_i32 : i32 to vector<2x16xi32>
    %69 = arith.addi %67, %68 : vector<2x16xi32>
    %70 = arith.cmpi eq, %17, %69 : vector<2x16xi32>
    %71 = arith.extui %70 : vector<2x16xi1> to vector<2x16xi32>
    %72 = arith.sitofp %71 : vector<2x16xi32> to vector<2x16xf32>
    %c12_i32 = arith.constant 12 : i32
    %73 = vector.broadcast %c12_i32 : i32 to vector<4x32xi32>
    %74 = arith.addi %18, %73 : vector<4x32xi32>
    %75 = arith.cmpi eq, %19, %74 : vector<4x32xi32>
    %76 = arith.extui %75 : vector<4x32xi1> to vector<4x32xi32>
    %77 = arith.sitofp %76 : vector<4x32xi32> to vector<4x32xf32>
    %cst_26 = arith.constant dense<0.000000e+00> : vector<2x4xf32>
    %78 = tpu.matmul %72, %14, %cst_26 {dimension_numbers = #tpu.dot_dimension_numbers<[1], [0], [0], [1], [0, 0, 1, 1], [], []>} : vector<2x16xf32>, vector<16x4xf32>, vector<2x4xf32> -> vector<2x4xf32>
    %cst_27 = arith.constant dense<0.000000e+00> : vector<2x32xf32>
    %79 = tpu.matmul %78, %77, %cst_27 {dimension_numbers = #tpu.dot_dimension_numbers<[1], [0], [0], [1], [0, 0, 1, 1], [], []>} : vector<2x4xf32>, vector<4x32xf32>, vector<2x32xf32> -> vector<2x32xf32>
    %80 = arith.addf %65, %79 : vector<2x32xf32>
    %c8_i32_28 = arith.constant 8 : i32
    %81 = vector.broadcast %c8_i32_28 : i32 to vector<2x16xi32>
    %82 = arith.muli %16, %81 : vector<2x16xi32>
    %c4_i32_29 = arith.constant 4 : i32
    %83 = vector.broadcast %c4_i32_29 : i32 to vector<2x16xi32>
    %84 = arith.addi %82, %83 : vector<2x16xi32>
    %85 = arith.cmpi eq, %17, %84 : vector<2x16xi32>
    %86 = arith.extui %85 : vector<2x16xi1> to vector<2x16xi32>
    %87 = arith.sitofp %86 : vector<2x16xi32> to vector<2x16xf32>
    %c16_i32 = arith.constant 16 : i32
    %88 = vector.broadcast %c16_i32 : i32 to vector<4x32xi32>
    %89 = arith.addi %18, %88 : vector<4x32xi32>
    %90 = arith.cmpi eq, %19, %89 : vector<4x32xi32>
    %91 = arith.extui %90 : vector<4x32xi1> to vector<4x32xi32>
    %92 = arith.sitofp %91 : vector<4x32xi32> to vector<4x32xf32>
    %cst_30 = arith.constant dense<0.000000e+00> : vector<2x4xf32>
    %93 = tpu.matmul %87, %14, %cst_30 {dimension_numbers = #tpu.dot_dimension_numbers<[1], [0], [0], [1], [0, 0, 1, 1], [], []>} : vector<2x16xf32>, vector<16x4xf32>, vector<2x4xf32> -> vector<2x4xf32>
    %cst_31 = arith.constant dense<0.000000e+00> : vector<2x32xf32>
    %94 = tpu.matmul %93, %92, %cst_31 {dimension_numbers = #tpu.dot_dimension_numbers<[1], [0], [0], [1], [0, 0, 1, 1], [], []>} : vector<2x4xf32>, vector<4x32xf32>, vector<2x32xf32> -> vector<2x32xf32>
    %95 = arith.addf %80, %94 : vector<2x32xf32>
    %c8_i32_32 = arith.constant 8 : i32
    %96 = vector.broadcast %c8_i32_32 : i32 to vector<2x16xi32>
    %97 = arith.muli %16, %96 : vector<2x16xi32>
    %c5_i32 = arith.constant 5 : i32
    %98 = vector.broadcast %c5_i32 : i32 to vector<2x16xi32>
    %99 = arith.addi %97, %98 : vector<2x16xi32>
    %100 = arith.cmpi eq, %17, %99 : vector<2x16xi32>
    %101 = arith.extui %100 : vector<2x16xi1> to vector<2x16xi32>
    %102 = arith.sitofp %101 : vector<2x16xi32> to vector<2x16xf32>
    %c20_i32 = arith.constant 20 : i32
    %103 = vector.broadcast %c20_i32 : i32 to vector<4x32xi32>
    %104 = arith.addi %18, %103 : vector<4x32xi32>
    %105 = arith.cmpi eq, %19, %104 : vector<4x32xi32>
    %106 = arith.extui %105 : vector<4x32xi1> to vector<4x32xi32>
    %107 = arith.sitofp %106 : vector<4x32xi32> to vector<4x32xf32>
    %cst_33 = arith.constant dense<0.000000e+00> : vector<2x4xf32>
    %108 = tpu.matmul %102, %14, %cst_33 {dimension_numbers = #tpu.dot_dimension_numbers<[1], [0], [0], [1], [0, 0, 1, 1], [], []>} : vector<2x16xf32>, vector<16x4xf32>, vector<2x4xf32> -> vector<2x4xf32>
    %cst_34 = arith.constant dense<0.000000e+00> : vector<2x32xf32>
    %109 = tpu.matmul %108, %107, %cst_34 {dimension_numbers = #tpu.dot_dimension_numbers<[1], [0], [0], [1], [0, 0, 1, 1], [], []>} : vector<2x4xf32>, vector<4x32xf32>, vector<2x32xf32> -> vector<2x32xf32>
    %110 = arith.addf %95, %109 : vector<2x32xf32>
    %c8_i32_35 = arith.constant 8 : i32
    %111 = vector.broadcast %c8_i32_35 : i32 to vector<2x16xi32>
    %112 = arith.muli %16, %111 : vector<2x16xi32>
    %c6_i32 = arith.constant 6 : i32
    %113 = vector.broadcast %c6_i32 : i32 to vector<2x16xi32>
    %114 = arith.addi %112, %113 : vector<2x16xi32>
    %115 = arith.cmpi eq, %17, %114 : vector<2x16xi32>
    %116 = arith.extui %115 : vector<2x16xi1> to vector<2x16xi32>
    %117 = arith.sitofp %116 : vector<2x16xi32> to vector<2x16xf32>
    %c24_i32 = arith.constant 24 : i32
    %118 = vector.broadcast %c24_i32 : i32 to vector<4x32xi32>
    %119 = arith.addi %18, %118 : vector<4x32xi32>
    %120 = arith.cmpi eq, %19, %119 : vector<4x32xi32>
    %121 = arith.extui %120 : vector<4x32xi1> to vector<4x32xi32>
    %122 = arith.sitofp %121 : vector<4x32xi32> to vector<4x32xf32>
    %cst_36 = arith.constant dense<0.000000e+00> : vector<2x4xf32>
    %123 = tpu.matmul %117, %14, %cst_36 {dimension_numbers = #tpu.dot_dimension_numbers<[1], [0], [0], [1], [0, 0, 1, 1], [], []>} : vector<2x16xf32>, vector<16x4xf32>, vector<2x4xf32> -> vector<2x4xf32>
    %cst_37 = arith.constant dense<0.000000e+00> : vector<2x32xf32>
    %124 = tpu.matmul %123, %122, %cst_37 {dimension_numbers = #tpu.dot_dimension_numbers<[1], [0], [0], [1], [0, 0, 1, 1], [], []>} : vector<2x4xf32>, vector<4x32xf32>, vector<2x32xf32> -> vector<2x32xf32>
    %125 = arith.addf %110, %124 : vector<2x32xf32>
    %c8_i32_38 = arith.constant 8 : i32
    %126 = vector.broadcast %c8_i32_38 : i32 to vector<2x16xi32>
    %127 = arith.muli %16, %126 : vector<2x16xi32>
    %c7_i32 = arith.constant 7 : i32
    %128 = vector.broadcast %c7_i32 : i32 to vector<2x16xi32>
    %129 = arith.addi %127, %128 : vector<2x16xi32>
    %130 = arith.cmpi eq, %17, %129 : vector<2x16xi32>
    %131 = arith.extui %130 : vector<2x16xi1> to vector<2x16xi32>
    %132 = arith.sitofp %131 : vector<2x16xi32> to vector<2x16xf32>
    %c28_i32 = arith.constant 28 : i32
    %133 = vector.broadcast %c28_i32 : i32 to vector<4x32xi32>
    %134 = arith.addi %18, %133 : vector<4x32xi32>
    %135 = arith.cmpi eq, %19, %134 : vector<4x32xi32>
    %136 = arith.extui %135 : vector<4x32xi1> to vector<4x32xi32>
    %137 = arith.sitofp %136 : vector<4x32xi32> to vector<4x32xf32>
    %cst_39 = arith.constant dense<0.000000e+00> : vector<2x4xf32>
    %138 = tpu.matmul %132, %14, %cst_39 {dimension_numbers = #tpu.dot_dimension_numbers<[1], [0], [0], [1], [0, 0, 1, 1], [], []>} : vector<2x16xf32>, vector<16x4xf32>, vector<2x4xf32> -> vector<2x4xf32>
    %cst_40 = arith.constant dense<0.000000e+00> : vector<2x32xf32>
    %139 = tpu.matmul %138, %137, %cst_40 {dimension_numbers = #tpu.dot_dimension_numbers<[1], [0], [0], [1], [0, 0, 1, 1], [], []>} : vector<2x4xf32>, vector<4x32xf32>, vector<2x32xf32> -> vector<2x32xf32>
    %140 = arith.addf %125, %139 : vector<2x32xf32>
    %141 = tpu.iota {dimensions = array<i32: 0>} : vector<32x4xi32>
    %142 = tpu.iota {dimensions = array<i32: 1>} : vector<32x4xi32>
    %c8_i32_41 = arith.constant 8 : i32
    %143 = vector.broadcast %c8_i32_41 : i32 to vector<32x4xi32>
    %144 = arith.muli %142, %143 : vector<32x4xi32>
    %c4_i32_42 = arith.constant 4 : i32
    %145 = vector.broadcast %c4_i32_42 : i32 to vector<32x4xi32>
    %146 = arith.addi %144, %145 : vector<32x4xi32>
    %147 = arith.cmpi eq, %141, %146 : vector<32x4xi32>
    %148 = arith.extui %147 : vector<32x4xi1> to vector<32x4xi32>
    %149 = arith.sitofp %148 : vector<32x4xi32> to vector<32x4xf32>
    %cst_43 = arith.constant dense<0.000000e+00> : vector<2x4xf32>
    %150 = tpu.matmul %140, %149, %cst_43 {dimension_numbers = #tpu.dot_dimension_numbers<[1], [0], [0], [1], [0, 0, 1, 1], [], []>} : vector<2x32xf32>, vector<32x4xf32>, vector<2x4xf32> -> vector<2x4xf32>
    %151 = tpu.iota {dimensions = array<i32: 1>} : vector<2x4xi32>
    %cst_44 = arith.constant dense<0xFF800000> : vector<2xf32>
    %152 = vector.multi_reduction <maximumf>, %150, %cst_44 [1] : vector<2x4xf32> to vector<2xf32>
    %153 = vector.shape_cast %152 : vector<2xf32> to vector<2x1xf32>
    %154 = vector.broadcast %153 : vector<2x1xf32> to vector<2x4xf32>
    %155 = arith.cmpf oeq, %150, %154 : vector<2x4xf32>
    %c4_i32_45 = arith.constant 4 : i32
    %156 = vector.broadcast %c4_i32_45 : i32 to vector<2x4xi32>
    %157 = arith.select %155, %151, %156 : vector<2x4xi1>, vector<2x4xi32>
    %cst_46 = arith.constant dense<2147483647> : vector<2xi32>
    %158 = vector.multi_reduction <minsi>, %157, %cst_46 [1] : vector<2x4xi32> to vector<2xi32>
    %159 = vector.shape_cast %158 : vector<2xi32> to vector<2x1xi32>
    %160 = vector.broadcast %159 : vector<2x1xi32> to vector<2x4xi32>
    %161 = arith.cmpi eq, %151, %160 : vector<2x4xi32>
    %162 = arith.extui %161 : vector<2x4xi1> to vector<2x4xi32>
    %163 = arith.sitofp %162 : vector<2x4xi32> to vector<2x4xf32>
    %cst_47 = arith.constant 0.000000e+00 : f32
    %164 = vector.broadcast %cst_47 : f32 to vector<2x8xf32>
    %165 = vector.extract_strided_slice %163 {offsets = [0, 0], sizes = [2, 1], strides = [1, 1]} : vector<2x4xf32> to vector<2x1xf32>
    %166 = vector.extract_strided_slice %140 {offsets = [0, 0], sizes = [2, 8], strides = [1, 1]} : vector<2x32xf32> to vector<2x8xf32>
    %167 = vector.broadcast %165 : vector<2x1xf32> to vector<2x8xf32>
    %168 = arith.mulf %167, %166 : vector<2x8xf32>
    %169 = arith.addf %164, %168 : vector<2x8xf32>
    %170 = vector.extract_strided_slice %163 {offsets = [0, 1], sizes = [2, 1], strides = [1, 1]} : vector<2x4xf32> to vector<2x1xf32>
    %171 = vector.extract_strided_slice %140 {offsets = [0, 8], sizes = [2, 8], strides = [1, 1]} : vector<2x32xf32> to vector<2x8xf32>
    %172 = vector.broadcast %170 : vector<2x1xf32> to vector<2x8xf32>
    %173 = arith.mulf %172, %171 : vector<2x8xf32>
    %174 = arith.addf %169, %173 : vector<2x8xf32>
    %175 = vector.extract_strided_slice %163 {offsets = [0, 2], sizes = [2, 1], strides = [1, 1]} : vector<2x4xf32> to vector<2x1xf32>
    %176 = vector.extract_strided_slice %140 {offsets = [0, 16], sizes = [2, 8], strides = [1, 1]} : vector<2x32xf32> to vector<2x8xf32>
    %177 = vector.broadcast %175 : vector<2x1xf32> to vector<2x8xf32>
    %178 = arith.mulf %177, %176 : vector<2x8xf32>
    %179 = arith.addf %174, %178 : vector<2x8xf32>
    %180 = vector.extract_strided_slice %163 {offsets = [0, 3], sizes = [2, 1], strides = [1, 1]} : vector<2x4xf32> to vector<2x1xf32>
    %181 = vector.extract_strided_slice %140 {offsets = [0, 24], sizes = [2, 8], strides = [1, 1]} : vector<2x32xf32> to vector<2x8xf32>
    %182 = vector.broadcast %180 : vector<2x1xf32> to vector<2x8xf32>
    %183 = arith.mulf %182, %181 : vector<2x8xf32>
    %184 = arith.addf %179, %183 : vector<2x8xf32>
    %c0_48 = arith.constant 0 : index
    %c0_49 = arith.constant 0 : index
    %185 = vector.load %arg6[%c0_48, %c0_49] : memref<2x8xf32, #tpu.memory_space<vmem>>, vector<2x8xf32>
    tpu.vector_store %arg6[%c0_48, %c0_49], %184 {strides = array<i32>} : memref<2x8xf32, #tpu.memory_space<vmem>>, vector<2x8xf32>,
    return
  }
}

</mosaic_0001>

<llo_original>
// kernel: expectile_dqn_forward.1
$region0: #{expectile_dqn_forward.1}
  #allocation0 [shape = 'u32[]', space=smem, size = 0x4, offset = 0x4, fixed_abs, tag = 'smem constant byte address 0x4 - core index']
  #allocation1 [shape = 'u32[144,128]{1,0:T(1,128)}', space=vmem, size = 0x12000, scoped, tag = 'internal scratch']
  %s0 = inlined_call_operand.vmem [shape: f32[16,16], index: 0, kind: input, shape index: {}]
  %s1 = inlined_call_operand.hbm [shape: f32[16,24], index: 1, kind: input, shape index: {}]
  %s2 = inlined_call_operand.vmem [shape: f32[1,24], index: 2, kind: input, shape index: {}]
  %s3 = inlined_call_operand.vmem [shape: f32[24,4], index: 3, kind: input, shape index: {}]
  %s4 = inlined_call_operand.vmem [shape: f32[1,4], index: 4, kind: input, shape index: {}]
  %s5 = inlined_call_operand.vmem [shape: f32[16,4], index: 5, kind: output, shape index: {0}]
  %s6 = inlined_call_operand.hbm [shape: f32[2,8], index: 6, kind: output, shape index: {1}]
  %7 = xla_tuple %s5, %s6
  %s8 = sld [smem:[#allocation0]]
  $region42: #{expectile_dqn_forward.1} parent=0
    _
  %s10 = ssub.s32 1, %s8
  %s11 = scalar_select 0, %s10, %s8
  $region1: #{expectile_dqn_forward.1} parent=0
    #allocation2 [shape = 'u8[8192]{0}', space=vmem, size = 0x2000, scoped, tag = 'input window, operand 1, single buffered']
    #allocation3 [shape = 's32[1]{0}', space=sflag, size = 0x4, scoped, tag = 'scoped memory for expectile_dqn_forward.1']
    #allocation4 [shape = 's32[1]{0}', space=sflag, size = 0x4, scoped, tag = 'scoped memory for expectile_dqn_forward.1']
    #allocation5 [shape = 'u8[1024]{0}', space=vmem, size = 0x400, scoped, tag = 'output window, operand 1, single buffered']
    %12 = vsyncpa [#allocation3], 0
    %13 = vsyncpa [#allocation4], 0
    // Predicated region
    $region2: #{expectile_dqn_forward.1} parent=1 // pred_check
      _
    $region3: #{expectile_dqn_forward.1} parent=1 // pred_check_branch
      %15 = sbr.rel (0) target = $region5
    $region4: #{expectile_dqn_forward.1} parent=1 // pred_region
      _
    $region5: #{expectile_dqn_forward.1} parent=1 // pred_fallthru
      _
    // Predicated region
    $region6: #{expectile_dqn_forward.1} parent=1 // pred_check
      _
    $region7: #{expectile_dqn_forward.1} parent=1 // pred_check_branch
      %17 = sbr.rel (0) target = $region9
    $region8: #{expectile_dqn_forward.1} parent=1 // pred_region
      %s19 = ssub.s32 256, 256
      %20 = vsyncadd [#allocation3], %s19
      %s21 = sshll.u32 [#allocation2], 4
      %s22 = int_to_ptr.vmem [resolvable:$true] %s21
      %27 = dma.hbm_to_vmem [thread:$0]  %s1, 256, %s22, [#allocation3], 128, 128, 8
    $region9: #{expectile_dqn_forward.1} parent=1 // pred_fallthru
      _
    // Predicated region
    $region10: #{expectile_dqn_forward.1} parent=1 // pred_check
      _
    $region11: #{expectile_dqn_forward.1} parent=1 // pred_check_branch
      %29 = sbr.rel (0) target = $region13
    $region12: #{expectile_dqn_forward.1} parent=1 // pred_region
      _
    $region13: #{expectile_dqn_forward.1} parent=1 // pred_fallthru
      _
    // Predicated region
    $region14: #{expectile_dqn_forward.1} parent=1 // pred_check
      _
    $region15: #{expectile_dqn_forward.1} parent=1 // pred_check_branch
      %31 = sbr.rel (0) target = $region17
    $region16: #{expectile_dqn_forward.1} parent=1 // pred_region
      _
    $region17: #{expectile_dqn_forward.1} parent=1 // pred_fallthru
      _
    // Predicated region
    $region18: #{expectile_dqn_forward.1} parent=1 // pred_check
      _
    $region19: #{expectile_dqn_forward.1} parent=1 // pred_check_branch
      %33 = sbr.rel (0) target = $region21
    $region20: #{expectile_dqn_forward.1} parent=1 // pred_region
      _
    $region21: #{expectile_dqn_forward.1} parent=1 // pred_fallthru
      _
    // Predicated region
    $region22: #{expectile_dqn_forward.1} parent=1 // pred_check
      _
    $region23: #{expectile_dqn_forward.1} parent=1 // pred_check_branch
      %35 = sbr.rel (0) target = $region25
    $region24: #{expectile_dqn_forward.1} parent=1 // pred_region
      %36 = dma.done [#allocation3], 256
    $region25: #{expectile_dqn_forward.1} parent=1 // pred_fallthru
      _
    %v37 = vld [vmem:[%s0] sm:$0xff]
    %v38 = vld [vmem:[%s0 + $0x8] sm:$0xff]
    %v39 = vld [vmem:[#allocation2] sm:$0xff]
    %v40 = vld [vmem:[#allocation2 + $0x8] sm:$0xff]
    %v41 = vld [vmem:[%s2] sm:$0x1]
    %v43 = vlaneseq
    %v44 = vshrl.u32 %v43, 7
    %v45 = vsub.s32 0, %v44
    %v46 = vrot.slane %v41, %v45
    %vm48 = vcmask 130048
    %v50 = vsel %vm48, %v37, 0
    %v53 = vsel %vm48, %v38, 0
    %55 = vmatprep.subr.mxu0 0.0
    %56 = vmatpush1.msra.mxu0 0.0
    %57 = vmatprep.subr.mxu0 0.0
    %58 = vmatpush1.msra.mxu0 0.0
    %59 = vmatprep.subr.mxu0 0.0
    %60 = vmatpush1.msra.mxu0 0.0
    %61 = vmatprep.subr.mxu0 0.0
    %62 = vmatpush1.msra.mxu0 0.0
    %63 = vmatprep.subr.mxu0 0.0
    %64 = vmatpush1.msra.mxu0 0.0
    %65 = vmatprep.subr.mxu0 0.0
    %66 = vmatpush1.msra.mxu0 0.0
    %67 = vmatprep.subr.mxu0 0.0
    %68 = vmatpush1.msra.mxu0 0.0
    %69 = vmatprep.subr.mxu0 0.0
    %70 = vmatpush1.msra.mxu0 0.0
    %71 = vmatprep.subr.mxu0 0.0
    %72 = vmatpush1.msra.mxu0 0.0
    %73 = vmatprep.subr.mxu0 0.0
    %74 = vmatpush1.msra.mxu0 0.0
    %75 = vmatprep.subr.mxu0 0.0
    %76 = vmatpush1.msra.mxu0 0.0
    %77 = vmatprep.subr.mxu0 0.0
    %78 = vmatpush1.msra.mxu0 0.0
    %79 = vmatprep.subr.mxu0 0.0
    %80 = vmatpush1.msra.mxu0 0.0
    %81 = vmatprep.subr.mxu0 0.0
    %82 = vmatpush1.msra.mxu0 0.0
    %83 = vmatprep.subr.mxu0 0.0
    %84 = vmatpush1.msra.mxu0 %v40
    %85 = vmatprep.subr.mxu0 0.0
    %86 = vmatpush1.msra.mxu0 %v39
    %87 = vmatprep.subr.mxu0 0.0
    %88 = vmatpush2.msra.mxu0 0.0
    %89 = vmatprep.subr.mxu0 0.0
    %90 = vmatpush2.msra.mxu0 0.0
    %91 = vmatprep.subr.mxu0 0.0
    %92 = vmatpush2.msra.mxu0 0.0
    %93 = vmatprep.subr.mxu0 0.0
    %94 = vmatpush2.msra.mxu0 0.0
    %95 = vmatprep.subr.mxu0 0.0
    %96 = vmatpush2.msra.mxu0 0.0
    %97 = vmatprep.subr.mxu0 0.0
    %98 = vmatpush2.msra.mxu0 0.0
    %99 = vmatprep.subr.mxu0 0.0
    %100 = vmatpush2.msra.mxu0 0.0
    %101 = vmatprep.subr.mxu0 0.0
    %102 = vmatpush2.msra.mxu0 0.0
    %103 = vmatprep.subr.mxu0 0.0
    %104 = vmatpush2.msra.mxu0 0.0
    %105 = vmatprep.subr.mxu0 0.0
    %106 = vmatpush2.msra.mxu0 0.0
    %107 = vmatprep.subr.mxu0 0.0
    %108 = vmatpush2.msra.mxu0 0.0
    %109 = vmatprep.subr.mxu0 0.0
    %110 = vmatpush2.msra.mxu0 0.0
    %111 = vmatprep.subr.mxu0 0.0
    %112 = vmatpush2.msra.mxu0 0.0
    %113 = vmatprep.subr.mxu0 0.0
    %114 = vmatpush2.msra.mxu0 0.0
    %115 = vmatprep.subr.mxu0 0.0
    %116 = vmatpush2.msra.mxu0 0.0
    %117 = vmatprep.subr.mxu0 0.0
    %118 = vmatpush2.msra.mxu0 0.0
    %119 = vmatprep.mubr.f32.mxu0 0.0
    %120 = vmatmul.mubr.f32.gmra.mxu0 %v50
    %v121 = vpop.f32.mrf.mxu0
    %v122 = vadd.f32 %v46, %v121
    %v123 = vpop.f32.mrf.mxu0
    %124 = vmatprep.mubr.f32.mxu0 0.0
    %125 = vmatmul.mubr.f32.gmra.mxu0 %v53
    %v126 = vpop.f32.mrf.mxu0
    %v127 = vadd.f32 %v46, %v126
    %v128 = vpop.f32.mrf.mxu0
    %129 = vdwg.mxu0
    %v130 = vmax.f32 %v122, 0.0
    %v131 = vmax.f32 %v127, 0.0
    %v132 = vld [vmem:[%s3] sm:$0xff]
    %v133 = vld [vmem:[%s3 + $0x8] sm:$0xff]
    %v134 = vld [vmem:[%s3 + $0x10] sm:$0xff]
    %v135 = vld [vmem:[%s4] sm:$0x1]
    %v137 = vlaneseq
    %v138 = vshrl.u32 %v137, 7
    %v139 = vsub.s32 0, %v138
    %v140 = vrot.slane %v135, %v139
    %vm142 = vcmask 195584
    %v144 = vsel %vm142, %v130, 0
    %v147 = vsel %vm142, %v131, 0
    %149 = vmatprep.subr.mxu0 0.0
    %150 = vmatpush1.msra.mxu0 0.0
    %151 = vmatprep.subr.mxu0 0.0
    %152 = vmatpush1.msra.mxu0 0.0
    %153 = vmatprep.subr.mxu0 0.0
    %154 = vmatpush1.msra.mxu0 0.0
    %155 = vmatprep.subr.mxu0 0.0
    %156 = vmatpush1.msra.mxu0 0.0
    %157 = vmatprep.subr.mxu0 0.0
    %158 = vmatpush1.msra.mxu0 0.0
    %159 = vmatprep.subr.mxu0 0.0
    %160 = vmatpush1.msra.mxu0 0.0
    %161 = vmatprep.subr.mxu0 0.0
    %162 = vmatpush1.msra.mxu0 0.0
    %163 = vmatprep.subr.mxu0 0.0
    %164 = vmatpush1.msra.mxu0 0.0
    %165 = vmatprep.subr.mxu0 0.0
    %166 = vmatpush1.msra.mxu0 0.0
    %167 = vmatprep.subr.mxu0 0.0
    %168 = vmatpush1.msra.mxu0 0.0
    %169 = vmatprep.subr.mxu0 0.0
    %170 = vmatpush1.msra.mxu0 0.0
    %171 = vmatprep.subr.mxu0 0.0
    %172 = vmatpush1.msra.mxu0 0.0
    %173 = vmatprep.subr.mxu0 0.0
    %174 = vmatpush1.msra.mxu0 0.0
    %175 = vmatprep.subr.mxu0 0.0
    %176 = vmatpush1.msra.mxu0 %v134
    %177 = vmatprep.subr.mxu0 0.0
    %178 = vmatpush1.msra.mxu0 %v133
    %179 = vmatprep.subr.mxu0 0.0
    %180 = vmatpush1.msra.mxu0 %v132
    %181 = vmatprep.subr.mxu0 0.0
    %182 = vmatpush2.msra.mxu0 0.0
    %183 = vmatprep.subr.mxu0 0.0
    %184 = vmatpush2.msra.mxu0 0.0
    %185 = vmatprep.subr.mxu0 0.0
    %186 = vmatpush2.msra.mxu0 0.0
    %187 = vmatprep.subr.mxu0 0.0
    %188 = vmatpush2.msra.mxu0 0.0
    %189 = vmatprep.subr.mxu0 0.0
    %190 = vmatpush2.msra.mxu0 0.0
    %191 = vmatprep.subr.mxu0 0.0
    %192 = vmatpush2.msra.mxu0 0.0
    %193 = vmatprep.subr.mxu0 0.0
    %194 = vmatpush2.msra.mxu0 0.0
    %195 = vmatprep.subr.mxu0 0.0
    %196 = vmatpush2.msra.mxu0 0.0
    %197 = vmatprep.subr.mxu0 0.0
    %198 = vmatpush2.msra.mxu0 0.0
    %199 = vmatprep.subr.mxu0 0.0
    %200 = vmatpush2.msra.mxu0 0.0
    %201 = vmatprep.subr.mxu0 0.0
    %202 = vmatpush2.msra.mxu0 0.0
    %203 = vmatprep.subr.mxu0 0.0
    %204 = vmatpush2.msra.mxu0 0.0
    %205 = vmatprep.subr.mxu0 0.0
    %206 = vmatpush2.msra.mxu0 0.0
    %207 = vmatprep.subr.mxu0 0.0
    %208 = vmatpush2.msra.mxu0 0.0
    %209 = vmatprep.subr.mxu0 0.0
    %210 = vmatpush2.msra.mxu0 0.0
    %211 = vmatprep.subr.mxu0 0.0
    %212 = vmatpush2.msra.mxu0 0.0
    %213 = vmatprep.mubr.f32.mxu0 0.0
    %214 = vmatmul.mubr.f32.gmra.mxu0 %v144
    %v215 = vpop.f32.mrf.mxu0
    %v216 = vadd.f32 %v140, %v215
    %v217 = vpop.f32.mrf.mxu0
    %218 = vmatprep.mubr.f32.mxu0 0.0
    %219 = vmatmul.mubr.f32.gmra.mxu0 %v147
    %v220 = vpop.f32.mrf.mxu0
    %v221 = vadd.f32 %v140, %v220
    %v222 = vpop.f32.mrf.mxu0
    %223 = vdwg.mxu0
    %v224 = vmax.f32 %v216, 0.0
    %v225 = vmax.f32 %v221, 0.0
    %vm226 = vcmask 31744
    %227 = vst.msk [vmem:[%s5] sm:$0xff] %vm226, %v224
    %228 = vst.msk [vmem:[%s5 + $0x8] sm:$0xff] %vm226, %v225
    %v229 = vlaneseq
    %v230 = vshrl.u32 %v229, 7
    %v231 = vlaneseq
    %v232 = vand.u32 %v231, 127
    %v233 = vmul.u32 %v230, 8
    %vm234 = vcmp.eq.s32.totalorder %v232, %v233
    %v235 = vsel %vm234, 1, 0
    %v236 = vcvt.s32.f32 %v235
    %vm237 = vcmp.eq.s32.totalorder %v232, %v230
    %v238 = vsel %vm237, 1, 0
    %v239 = vcvt.s32.f32 %v238
    %v241 = vsel %vm48, %v236, 0
    %243 = vmatprep.subr.mxu0 0.0
    %244 = vmatpush1.msra.mxu0 0.0
    %245 = vmatprep.subr.mxu0 0.0
    %246 = vmatpush1.msra.mxu0 0.0
    %247 = vmatprep.subr.mxu0 0.0
    %248 = vmatpush1.msra.mxu0 0.0
    %249 = vmatprep.subr.mxu0 0.0
    %250 = vmatpush1.msra.mxu0 0.0
    %251 = vmatprep.subr.mxu0 0.0
    %252 = vmatpush1.msra.mxu0 0.0
    %253 = vmatprep.subr.mxu0 0.0
    %254 = vmatpush1.msra.mxu0 0.0
    %255 = vmatprep.subr.mxu0 0.0
    %256 = vmatpush1.msra.mxu0 0.0
    %257 = vmatprep.subr.mxu0 0.0
    %258 = vmatpush1.msra.mxu0 0.0
    %259 = vmatprep.subr.mxu0 0.0
    %260 = vmatpush1.msra.mxu0 0.0
    %261 = vmatprep.subr.mxu0 0.0
    %262 = vmatpush1.msra.mxu0 0.0
    %263 = vmatprep.subr.mxu0 0.0
    %264 = vmatpush1.msra.mxu0 0.0
    %265 = vmatprep.subr.mxu0 0.0
    %266 = vmatpush1.msra.mxu0 0.0
    %267 = vmatprep.subr.mxu0 0.0
    %268 = vmatpush1.msra.mxu0 0.0
    %269 = vmatprep.subr.mxu0 0.0
    %270 = vmatpush1.msra.mxu0 0.0
    %271 = vmatprep.subr.mxu0 0.0
    %272 = vmatpush1.msra.mxu0 %v225
    %273 = vmatprep.subr.mxu0 0.0
    %274 = vmatpush1.msra.mxu0 %v224
    %275 = vmatprep.subr.mxu0 0.0
    %276 = vmatpush2.msra.mxu0 0.0
    %277 = vmatprep.subr.mxu0 0.0
    %278 = vmatpush2.msra.mxu0 0.0
    %279 = vmatprep.subr.mxu0 0.0
    %280 = vmatpush2.msra.mxu0 0.0
    %281 = vmatprep.subr.mxu0 0.0
    %282 = vmatpush2.msra.mxu0 0.0
    %283 = vmatprep.subr.mxu0 0.0
    %284 = vmatpush2.msra.mxu0 0.0
    %285 = vmatprep.subr.mxu0 0.0
    %286 = vmatpush2.msra.mxu0 0.0
    %287 = vmatprep.subr.mxu0 0.0
    %288 = vmatpush2.msra.mxu0 0.0
    %289 = vmatprep.subr.mxu0 0.0
    %290 = vmatpush2.msra.mxu0 0.0
    %291 = vmatprep.subr.mxu0 0.0
    %292 = vmatpush2.msra.mxu0 0.0
    %293 = vmatprep.subr.mxu0 0.0
    %294 = vmatpush2.msra.mxu0 0.0
    %295 = vmatprep.subr.mxu0 0.0
    %296 = vmatpush2.msra.mxu0 0.0
    %297 = vmatprep.subr.mxu0 0.0
    %298 = vmatpush2.msra.mxu0 0.0
    %299 = vmatprep.subr.mxu0 0.0
    %300 = vmatpush2.msra.mxu0 0.0
    %301 = vmatprep.subr.mxu0 0.0
    %302 = vmatpush2.msra.mxu0 0.0
    %303 = vmatprep.subr.mxu0 0.0
    %304 = vmatpush2.msra.mxu0 0.0
    %305 = vmatprep.subr.mxu0 0.0
    %306 = vmatpush2.msra.mxu0 0.0
    %307 = vmatprep.mubr.f32.mxu0 0.0
    %308 = vmatmul.mubr.f32.gmra.mxu0 %v241
    %v309 = vpop.f32.mrf.mxu0
    %v310 = vadd.f32 0.0, %v309
    %v311 = vpop.f32.mrf.mxu0
    %312 = vdwg.mxu0
    %v313 = vadd.s32 %v233, 1
    %vm314 = vcmp.eq.s32.totalorder %v232, %v313
    %v315 = vsel %vm314, 1, 0
    %v316 = vcvt.s32.f32 %v315
    %v317 = vadd.s32 %v230, 4
    %vm318 = vcmp.eq.s32.totalorder %v232, %v317
    %v319 = vsel %vm318, 1, 0
    %v320 = vcvt.s32.f32 %v319
    %v322 = vsel %vm48, %v316, 0
    %324 = vmatprep.subr.mxu0 0.0
    %325 = vmatpush1.msra.mxu0 0.0
    %326 = vmatprep.subr.mxu0 0.0
    %327 = vmatpush1.msra.mxu0 0.0
    %328 = vmatprep.subr.mxu0 0.0
    %329 = vmatpush1.msra.mxu0 0.0
    %330 = vmatprep.subr.mxu0 0.0
    %331 = vmatpush1.msra.mxu0 0.0
    %332 = vmatprep.subr.mxu0 0.0
    %333 = vmatpush1.msra.mxu0 0.0
    %334 = vmatprep.subr.mxu0 0.0
    %335 = vmatpush1.msra.mxu0 0.0
    %336 = vmatprep.subr.mxu0 0.0
    %337 = vmatpush1.msra.mxu0 0.0
    %338 = vmatprep.subr.mxu0 0.0
    %339 = vmatpush1.msra.mxu0 0.0
    %340 = vmatprep.subr.mxu0 0.0
    %341 = vmatpush1.msra.mxu0 0.0
    %342 = vmatprep.subr.mxu0 0.0
    %343 = vmatpush1.msra.mxu0 0.0
    %344 = vmatprep.subr.mxu0 0.0
    %345 = vmatpush1.msra.mxu0 0.0
    %346 = vmatprep.subr.mxu0 0.0
    %347 = vmatpush1.msra.mxu0 0.0
    %348 = vmatprep.subr.mxu0 0.0
    %349 = vmatpush1.msra.mxu0 0.0
    %350 = vmatprep.subr.mxu0 0.0
    %351 = vmatpush1.msra.mxu0 0.0
    %352 = vmatprep.subr.mxu0 0.0
    %353 = vmatpush1.msra.mxu0 %v225
    %354 = vmatprep.subr.mxu0 0.0
    %355 = vmatpush1.msra.mxu0 %v224
    %356 = vmatprep.subr.mxu0 0.0
    %357 = vmatpush2.msra.mxu0 0.0
    %358 = vmatprep.subr.mxu0 0.0
    %359 = vmatpush2.msra.mxu0 0.0
    %360 = vmatprep.subr.mxu0 0.0
    %361 = vmatpush2.msra.mxu0 0.0
    %362 = vmatprep.subr.mxu0 0.0
    %363 = vmatpush2.msra.mxu0 0.0
    %364 = vmatprep.subr.mxu0 0.0
    %365 = vmatpush2.msra.mxu0 0.0
    %366 = vmatprep.subr.mxu0 0.0
    %367 = vmatpush2.msra.mxu0 0.0
    %368 = vmatprep.subr.mxu0 0.0
    %369 = vmatpush2.msra.mxu0 0.0
    %370 = vmatprep.subr.mxu0 0.0
    %371 = vmatpush2.msra.mxu0 0.0
    %372 = vmatprep.subr.mxu0 0.0
    %373 = vmatpush2.msra.mxu0 0.0
    %374 = vmatprep.subr.mxu0 0.0
    %375 = vmatpush2.msra.mxu0 0.0
    %376 = vmatprep.subr.mxu0 0.0
    %377 = vmatpush2.msra.mxu0 0.0
    %378 = vmatprep.subr.mxu0 0.0
    %379 = vmatpush2.msra.mxu0 0.0
    %380 = vmatprep.subr.mxu0 0.0
    %381 = vmatpush2.msra.mxu0 0.0
    %382 = vmatprep.subr.mxu0 0.0
    %383 = vmatpush2.msra.mxu0 0.0
    %384 = vmatprep.subr.mxu0 0.0
    %385 = vmatpush2.msra.mxu0 0.0
    %386 = vmatprep.subr.mxu0 0.0
    %387 = vmatpush2.msra.mxu0 0.0
    %388 = vmatprep.mubr.f32.mxu0 0.0
    %389 = vmatmul.mubr.f32.gmra.mxu0 %v322
    %v390 = vpop.f32.mrf.mxu0
    %v391 = vadd.f32 0.0, %v390
    %v392 = vpop.f32.mrf.mxu0
    %393 = vdwg.mxu0
    %v395 = vsel %vm226, %v391, 0
    %vm397 = vcmask 1043456
    %v399 = vsel %vm397, %v320, 0
    %401 = vmatprep.subr.mxu0 0.0
    %402 = vmatpush1.msra.mxu0 0.0
    %403 = vmatprep.subr.mxu0 0.0
    %404 = vmatpush1.msra.mxu0 0.0
    %405 = vmatprep.subr.mxu0 0.0
    %406 = vmatpush1.msra.mxu0 0.0
    %407 = vmatprep.subr.mxu0 0.0
    %408 = vmatpush1.msra.mxu0 0.0
    %409 = vmatprep.subr.mxu0 0.0
    %410 = vmatpush1.msra.mxu0 0.0
    %411 = vmatprep.subr.mxu0 0.0
    %412 = vmatpush1.msra.mxu0 0.0
    %413 = vmatprep.subr.mxu0 0.0
    %414 = vmatpush1.msra.mxu0 0.0
    %415 = vmatprep.subr.mxu0 0.0
    %416 = vmatpush1.msra.mxu0 0.0
    %417 = vmatprep.subr.mxu0 0.0
    %418 = vmatpush1.msra.mxu0 0.0
    %419 = vmatprep.subr.mxu0 0.0
    %420 = vmatpush1.msra.mxu0 0.0
    %421 = vmatprep.subr.mxu0 0.0
    %422 = vmatpush1.msra.mxu0 0.0
    %423 = vmatprep.subr.mxu0 0.0
    %424 = vmatpush1.msra.mxu0 0.0
    %425 = vmatprep.subr.mxu0 0.0
    %426 = vmatpush1.msra.mxu0 0.0
    %427 = vmatprep.subr.mxu0 0.0
    %428 = vmatpush1.msra.mxu0 0.0
    %429 = vmatprep.subr.mxu0 0.0
    %430 = vmatpush1.msra.mxu0 0.0
    %431 = vmatprep.subr.mxu0 0.0
    %432 = vmatpush1.msra.mxu0 %v399
    %433 = vmatprep.subr.mxu0 0.0
    %434 = vmatpush2.msra.mxu0 0.0
    %435 = vmatprep.subr.mxu0 0.0
    %436 = vmatpush2.msra.mxu0 0.0
    %437 = vmatprep.subr.mxu0 0.0
    %438 = vmatpush2.msra.mxu0 0.0
    %439 = vmatprep.subr.mxu0 0.0
    %440 = vmatpush2.msra.mxu0 0.0
    %441 = vmatprep.subr.mxu0 0.0
    %442 = vmatpush2.msra.mxu0 0.0
    %443 = vmatprep.subr.mxu0 0.0
    %444 = vmatpush2.msra.mxu0 0.0
    %445 = vmatprep.subr.mxu0 0.0
    %446 = vmatpush2.msra.mxu0 0.0
    %447 = vmatprep.subr.mxu0 0.0
    %448 = vmatpush2.msra.mxu0 0.0
    %449 = vmatprep.subr.mxu0 0.0
    %450 = vmatpush2.msra.mxu0 0.0
    %451 = vmatprep.subr.mxu0 0.0
    %452 = vmatpush2.msra.mxu0 0.0
    %453 = vmatprep.subr.mxu0 0.0
    %454 = vmatpush2.msra.mxu0 0.0
    %455 = vmatprep.subr.mxu0 0.0
    %456 = vmatpush2.msra.mxu0 0.0
    %457 = vmatprep.subr.mxu0 0.0
    %458 = vmatpush2.msra.mxu0 0.0
    %459 = vmatprep.subr.mxu0 0.0
    %460 = vmatpush2.msra.mxu0 0.0
    %461 = vmatprep.subr.mxu0 0.0
    %462 = vmatpush2.msra.mxu0 0.0
    %463 = vmatprep.subr.mxu0 0.0
    %464 = vmatpush2.msra.mxu0 0.0
    %465 = vmatprep.mubr.f32.mxu0 0.0
    %466 = vmatmul.mubr.f32.gmra.mxu0 %v395
    %v467 = vpop.f32.mrf.mxu0
    %v468 = vadd.f32 0.0, %v467
    %v469 = vpop.f32.mrf.mxu0
    %470 = vdwg.mxu0
    %v472 = vsel %vm226, %v310, 0
    %v475 = vsel %vm397, %v239, 0
    %477 = vmatprep.subr.mxu0 0.0
    %478 = vmatpush1.msra.mxu0 0.0
    %479 = vmatprep.subr.mxu0 0.0
    %480 = vmatpush1.msra.mxu0 0.0
    %481 = vmatprep.subr.mxu0 0.0
    %482 = vmatpush1.msra.mxu0 0.0
    %483 = vmatprep.subr.mxu0 0.0
    %484 = vmatpush1.msra.mxu0 0.0
    %485 = vmatprep.subr.mxu0 0.0
    %486 = vmatpush1.msra.mxu0 0.0
    %487 = vmatprep.subr.mxu0 0.0
    %488 = vmatpush1.msra.mxu0 0.0
    %489 = vmatprep.subr.mxu0 0.0
    %490 = vmatpush1.msra.mxu0 0.0
    %491 = vmatprep.subr.mxu0 0.0
    %492 = vmatpush1.msra.mxu0 0.0
    %493 = vmatprep.subr.mxu0 0.0
    %494 = vmatpush1.msra.mxu0 0.0
    %495 = vmatprep.subr.mxu0 0.0
    %496 = vmatpush1.msra.mxu0 0.0
    %497 = vmatprep.subr.mxu0 0.0
    %498 = vmatpush1.msra.mxu0 0.0
    %499 = vmatprep.subr.mxu0 0.0
    %500 = vmatpush1.msra.mxu0 0.0
    %501 = vmatprep.subr.mxu0 0.0
    %502 = vmatpush1.msra.mxu0 0.0
    %503 = vmatprep.subr.mxu0 0.0
    %504 = vmatpush1.msra.mxu0 0.0
    %505 = vmatprep.subr.mxu0 0.0
    %506 = vmatpush1.msra.mxu0 0.0
    %507 = vmatprep.subr.mxu0 0.0
    %508 = vmatpush1.msra.mxu0 %v475
    %509 = vmatprep.subr.mxu0 0.0
    %510 = vmatpush2.msra.mxu0 0.0
    %511 = vmatprep.subr.mxu0 0.0
    %512 = vmatpush2.msra.mxu0 0.0
    %513 = vmatprep.subr.mxu0 0.0
    %514 = vmatpush2.msra.mxu0 0.0
    %515 = vmatprep.subr.mxu0 0.0
    %516 = vmatpush2.msra.mxu0 0.0
    %517 = vmatprep.subr.mxu0 0.0
    %518 = vmatpush2.msra.mxu0 0.0
    %519 = vmatprep.subr.mxu0 0.0
    %520 = vmatpush2.msra.mxu0 0.0
    %521 = vmatprep.subr.mxu0 0.0
    %522 = vmatpush2.msra.mxu0 0.0
    %523 = vmatprep.subr.mxu0 0.0
    %524 = vmatpush2.msra.mxu0 0.0
    %525 = vmatprep.subr.mxu0 0.0
    %526 = vmatpush2.msra.mxu0 0.0
    %527 = vmatprep.subr.mxu0 0.0
    %528 = vmatpush2.msra.mxu0 0.0
    %529 = vmatprep.subr.mxu0 0.0
    %530 = vmatpush2.msra.mxu0 0.0
    %531 = vmatprep.subr.mxu0 0.0
    %532 = vmatpush2.msra.mxu0 0.0
    %533 = vmatprep.subr.mxu0 0.0
    %534 = vmatpush2.msra.mxu0 0.0
    %535 = vmatprep.subr.mxu0 0.0
    %536 = vmatpush2.msra.mxu0 0.0
    %537 = vmatprep.subr.mxu0 0.0
    %538 = vmatpush2.msra.mxu0 0.0
    %539 = vmatprep.subr.mxu0 0.0
    %540 = vmatpush2.msra.mxu0 0.0
    %541 = vmatprep.mubr.f32.mxu0 0.0
    %542 = vmatmul.mubr.f32.gmra.mxu0 %v472
    %v543 = vpop.f32.mrf.mxu0
    %v544 = vadd.f32 %v468, %v543
    %v545 = vpop.f32.mrf.mxu0
    %546 = vdwg.mxu0
    %v547 = vadd.s32 %v233, 2
    %vm548 = vcmp.eq.s32.totalorder %v232, %v547
    %v549 = vsel %vm548, 1, 0
    %v550 = vcvt.s32.f32 %v549
    %v551 = vadd.s32 %v230, 8
    %vm552 = vcmp.eq.s32.totalorder %v232, %v551
    %v553 = vsel %vm552, 1, 0
    %v554 = vcvt.s32.f32 %v553
    %v556 = vsel %vm48, %v550, 0
    %558 = vmatprep.subr.mxu0 0.0
    %559 = vmatpush1.msra.mxu0 0.0
    %560 = vmatprep.subr.mxu0 0.0
    %561 = vmatpush1.msra.mxu0 0.0
    %562 = vmatprep.subr.mxu0 0.0
    %563 = vmatpush1.msra.mxu0 0.0
    %564 = vmatprep.subr.mxu0 0.0
    %565 = vmatpush1.msra.mxu0 0.0
    %566 = vmatprep.subr.mxu0 0.0
    %567 = vmatpush1.msra.mxu0 0.0
    %568 = vmatprep.subr.mxu0 0.0
    %569 = vmatpush1.msra.mxu0 0.0
    %570 = vmatprep.subr.mxu0 0.0
    %571 = vmatpush1.msra.mxu0 0.0
    %572 = vmatprep.subr.mxu0 0.0
    %573 = vmatpush1.msra.mxu0 0.0
    %574 = vmatprep.subr.mxu0 0.0
    %575 = vmatpush1.msra.mxu0 0.0
    %576 = vmatprep.subr.mxu0 0.0
    %577 = vmatpush1.msra.mxu0 0.0
    %578 = vmatprep.subr.mxu0 0.0
    %579 = vmatpush1.msra.mxu0 0.0
    %580 = vmatprep.subr.mxu0 0.0
    %581 = vmatpush1.msra.mxu0 0.0
    %582 = vmatprep.subr.mxu0 0.0
    %583 = vmatpush1.msra.mxu0 0.0
    %584 = vmatprep.subr.mxu0 0.0
    %585 = vmatpush1.msra.mxu0 0.0
    %586 = vmatprep.subr.mxu0 0.0
    %587 = vmatpush1.msra.mxu0 %v225
    %588 = vmatprep.subr.mxu0 0.0
    %589 = vmatpush1.msra.mxu0 %v224
    %590 = vmatprep.subr.mxu0 0.0
    %591 = vmatpush2.msra.mxu0 0.0
    %592 = vmatprep.subr.mxu0 0.0
    %593 = vmatpush2.msra.mxu0 0.0
    %594 = vmatprep.subr.mxu0 0.0
    %595 = vmatpush2.msra.mxu0 0.0
    %596 = vmatprep.subr.mxu0 0.0
    %597 = vmatpush2.msra.mxu0 0.0
    %598 = vmatprep.subr.mxu0 0.0
    %599 = vmatpush2.msra.mxu0 0.0
    %600 = vmatprep.subr.mxu0 0.0
    %601 = vmatpush2.msra.mxu0 0.0
    %602 = vmatprep.subr.mxu0 0.0
    %603 = vmatpush2.msra.mxu0 0.0
    %604 = vmatprep.subr.mxu0 0.0
    %605 = vmatpush2.msra.mxu0 0.0
    %606 = vmatprep.subr.mxu0 0.0
    %607 = vmatpush2.msra.mxu0 0.0
    %608 = vmatprep.subr.mxu0 0.0
    %609 = vmatpush2.msra.mxu0 0.0
    %610 = vmatprep.subr.mxu0 0.0
    %611 = vmatpush2.msra.mxu0 0.0
    %612 = vmatprep.subr.mxu0 0.0
    %613 = vmatpush2.msra.mxu0 0.0
    %614 = vmatprep.subr.mxu0 0.0
    %615 = vmatpush2.msra.mxu0 0.0
    %616 = vmatprep.subr.mxu0 0.0
    %617 = vmatpush2.msra.mxu0 0.0
    %618 = vmatprep.subr.mxu0 0.0
    %619 = vmatpush2.msra.mxu0 0.0
    %620 = vmatprep.subr.mxu0 0.0
    %621 = vmatpush2.msra.mxu0 0.0
    %622 = vmatprep.mubr.f32.mxu0 0.0
    %623 = vmatmul.mubr.f32.gmra.mxu0 %v556
    %v624 = vpop.f32.mrf.mxu0
    %v625 = vadd.f32 0.0, %v624
    %v626 = vpop.f32.mrf.mxu0
    %627 = vdwg.mxu0
    %v629 = vsel %vm226, %v625, 0
    %v632 = vsel %vm397, %v554, 0
    %634 = vmatprep.subr.mxu0 0.0
    %635 = vmatpush1.msra.mxu0 0.0
    %636 = vmatprep.subr.mxu0 0.0
    %637 = vmatpush1.msra.mxu0 0.0
    %638 = vmatprep.subr.mxu0 0.0
    %639 = vmatpush1.msra.mxu0 0.0
    %640 = vmatprep.subr.mxu0 0.0
    %641 = vmatpush1.msra.mxu0 0.0
    %642 = vmatprep.subr.mxu0 0.0
    %643 = vmatpush1.msra.mxu0 0.0
    %644 = vmatprep.subr.mxu0 0.0
    %645 = vmatpush1.msra.mxu0 0.0
    %646 = vmatprep.subr.mxu0 0.0
    %647 = vmatpush1.msra.mxu0 0.0
    %648 = vmatprep.subr.mxu0 0.0
    %649 = vmatpush1.msra.mxu0 0.0
    %650 = vmatprep.subr.mxu0 0.0
    %651 = vmatpush1.msra.mxu0 0.0
    %652 = vmatprep.subr.mxu0 0.0
    %653 = vmatpush1.msra.mxu0 0.0
    %654 = vmatprep.subr.mxu0 0.0
    %655 = vmatpush1.msra.mxu0 0.0
    %656 = vmatprep.subr.mxu0 0.0
    %657 = vmatpush1.msra.mxu0 0.0
    %658 = vmatprep.subr.mxu0 0.0
    %659 = vmatpush1.msra.mxu0 0.0
    %660 = vmatprep.subr.mxu0 0.0
    %661 = vmatpush1.msra.mxu0 0.0
    %662 = vmatprep.subr.mxu0 0.0
    %663 = vmatpush1.msra.mxu0 0.0
    %664 = vmatprep.subr.mxu0 0.0
    %665 = vmatpush1.msra.mxu0 %v632
    %666 = vmatprep.subr.mxu0 0.0
    %667 = vmatpush2.msra.mxu0 0.0
    %668 = vmatprep.subr.mxu0 0.0
    %669 = vmatpush2.msra.mxu0 0.0
    %670 = vmatprep.subr.mxu0 0.0
    %671 = vmatpush2.msra.mxu0 0.0
    %672 = vmatprep.subr.mxu0 0.0
    %673 = vmatpush2.msra.mxu0 0.0
    %674 = vmatprep.subr.mxu0 0.0
    %675 = vmatpush2.msra.mxu0 0.0
    %676 = vmatprep.subr.mxu0 0.0
    %677 = vmatpush2.msra.mxu0 0.0
    %678 = vmatprep.subr.mxu0 0.0
    %679 = vmatpush2.msra.mxu0 0.0
    %680 = vmatprep.subr.mxu0 0.0
    %681 = vmatpush2.msra.mxu0 0.0
    %682 = vmatprep.subr.mxu0 0.0
    %683 = vmatpush2.msra.mxu0 0.0
    %684 = vmatprep.subr.mxu0 0.0
    %685 = vmatpush2.msra.mxu0 0.0
    %686 = vmatprep.subr.mxu0 0.0
    %687 = vmatpush2.msra.mxu0 0.0
    %688 = vmatprep.subr.mxu0 0.0
    %689 = vmatpush2.msra.mxu0 0.0
    %690 = vmatprep.subr.mxu0 0.0
    %691 = vmatpush2.msra.mxu0 0.0
    %692 = vmatprep.subr.mxu0 0.0
    %693 = vmatpush2.msra.mxu0 0.0
    %694 = vmatprep.subr.mxu0 0.0
    %695 = vmatpush2.msra.mxu0 0.0
    %696 = vmatprep.subr.mxu0 0.0
    %697 = vmatpush2.msra.mxu0 0.0
    %698 = vmatprep.mubr.f32.mxu0 0.0
    %699 = vmatmul.mubr.f32.gmra.mxu0 %v629
    %v700 = vpop.f32.mrf.mxu0
    %v701 = vadd.f32 0.0, %v700
    %v702 = vpop.f32.mrf.mxu0
    %703 = vdwg.mxu0
    %v704 = vadd.f32 %v544, %v701
    %v705 = vadd.s32 %v233, 3
    %vm706 = vcmp.eq.s32.totalorder %v232, %v705
    %v707 = vsel %vm706, 1, 0
    %v708 = vcvt.s32.f32 %v707
    %v709 = vadd.s32 %v230, 12
    %vm710 = vcmp.eq.s32.totalorder %v232, %v709
    %v711 = vsel %vm710, 1, 0
    %v712 = vcvt.s32.f32 %v711
    %v714 = vsel %vm48, %v708, 0
    %716 = vmatprep.subr.mxu0 0.0
    %717 = vmatpush1.msra.mxu0 0.0
    %718 = vmatprep.subr.mxu0 0.0
    %719 = vmatpush1.msra.mxu0 0.0
    %720 = vmatprep.subr.mxu0 0.0
    %721 = vmatpush1.msra.mxu0 0.0
    %722 = vmatprep.subr.mxu0 0.0
    %723 = vmatpush1.msra.mxu0 0.0
    %724 = vmatprep.subr.mxu0 0.0
    %725 = vmatpush1.msra.mxu0 0.0
    %726 = vmatprep.subr.mxu0 0.0
    %727 = vmatpush1.msra.mxu0 0.0
    %728 = vmatprep.subr.mxu0 0.0
    %729 = vmatpush1.msra.mxu0 0.0
    %730 = vmatprep.subr.mxu0 0.0
    %731 = vmatpush1.msra.mxu0 0.0
    %732 = vmatprep.subr.mxu0 0.0
    %733 = vmatpush1.msra.mxu0 0.0
    %734 = vmatprep.subr.mxu0 0.0
    %735 = vmatpush1.msra.mxu0 0.0
    %736 = vmatprep.subr.mxu0 0.0
    %737 = vmatpush1.msra.mxu0 0.0
    %738 = vmatprep.subr.mxu0 0.0
    %739 = vmatpush1.msra.mxu0 0.0
    %740 = vmatprep.subr.mxu0 0.0
    %741 = vmatpush1.msra.mxu0 0.0
    %742 = vmatprep.subr.mxu0 0.0
    %743 = vmatpush1.msra.mxu0 0.0
    %744 = vmatprep.subr.mxu0 0.0
    %745 = vmatpush1.msra.mxu0 %v225
    %746 = vmatprep.subr.mxu0 0.0
    %747 = vmatpush1.msra.mxu0 %v224
    %748 = vmatprep.subr.mxu0 0.0
    %749 = vmatpush2.msra.mxu0 0.0
    %750 = vmatprep.subr.mxu0 0.0
    %751 = vmatpush2.msra.mxu0 0.0
    %752 = vmatprep.subr.mxu0 0.0
    %753 = vmatpush2.msra.mxu0 0.0
    %754 = vmatprep.subr.mxu0 0.0
    %755 = vmatpush2.msra.mxu0 0.0
    %756 = vmatprep.subr.mxu0 0.0
    %757 = vmatpush2.msra.mxu0 0.0
    %758 = vmatprep.subr.mxu0 0.0
    %759 = vmatpush2.msra.mxu0 0.0
    %760 = vmatprep.subr.mxu0 0.0
    %761 = vmatpush2.msra.mxu0 0.0
    %762 = vmatprep.subr.mxu0 0.0
    %763 = vmatpush2.msra.mxu0 0.0
    %764 = vmatprep.subr.mxu0 0.0
    %765 = vmatpush2.msra.mxu0 0.0
    %766 = vmatprep.subr.mxu0 0.0
    %767 = vmatpush2.msra.mxu0 0.0
    %768 = vmatprep.subr.mxu0 0.0
    %769 = vmatpush2.msra.mxu0 0.0
    %770 = vmatprep.subr.mxu0 0.0
    %771 = vmatpush2.msra.mxu0 0.0
    %772 = vmatprep.subr.mxu0 0.0
    %773 = vmatpush2.msra.mxu0 0.0
    %774 = vmatprep.subr.mxu0 0.0
    %775 = vmatpush2.msra.mxu0 0.0
    %776 = vmatprep.subr.mxu0 0.0
    %777 = vmatpush2.msra.mxu0 0.0
    %778 = vmatprep.subr.mxu0 0.0
    %779 = vmatpush2.msra.mxu0 0.0
    %780 = vmatprep.mubr.f32.mxu0 0.0
    %781 = vmatmul.mubr.f32.gmra.mxu0 %v714
    %v782 = vpop.f32.mrf.mxu0
    %v783 = vadd.f32 0.0, %v782
    %v784 = vpop.f32.mrf.mxu0
    %785 = vdwg.mxu0
    %v787 = vsel %vm226, %v783, 0
    %v790 = vsel %vm397, %v712, 0
    %792 = vmatprep.subr.mxu0 0.0
    %793 = vmatpush1.msra.mxu0 0.0
    %794 = vmatprep.subr.mxu0 0.0
    %795 = vmatpush1.msra.mxu0 0.0
    %796 = vmatprep.subr.mxu0 0.0
    %797 = vmatpush1.msra.mxu0 0.0
    %798 = vmatprep.subr.mxu0 0.0
    %799 = vmatpush1.msra.mxu0 0.0
    %800 = vmatprep.subr.mxu0 0.0
    %801 = vmatpush1.msra.mxu0 0.0
    %802 = vmatprep.subr.mxu0 0.0
    %803 = vmatpush1.msra.mxu0 0.0
    %804 = vmatprep.subr.mxu0 0.0
    %805 = vmatpush1.msra.mxu0 0.0
    %806 = vmatprep.subr.mxu0 0.0
    %807 = vmatpush1.msra.mxu0 0.0
    %808 = vmatprep.subr.mxu0 0.0
    %809 = vmatpush1.msra.mxu0 0.0
    %810 = vmatprep.subr.mxu0 0.0
    %811 = vmatpush1.msra.mxu0 0.0
    %812 = vmatprep.subr.mxu0 0.0
    %813 = vmatpush1.msra.mxu0 0.0
    %814 = vmatprep.subr.mxu0 0.0
    %815 = vmatpush1.msra.mxu0 0.0
    %816 = vmatprep.subr.mxu0 0.0
    %817 = vmatpush1.msra.mxu0 0.0
    %818 = vmatprep.subr.mxu0 0.0
    %819 = vmatpush1.msra.mxu0 0.0
    %820 = vmatprep.subr.mxu0 0.0
    %821 = vmatpush1.msra.mxu0 0.0
    %822 = vmatprep.subr.mxu0 0.0
    %823 = vmatpush1.msra.mxu0 %v790
    %824 = vmatprep.subr.mxu0 0.0
    %825 = vmatpush2.msra.mxu0 0.0
    %826 = vmatprep.subr.mxu0 0.0
    %827 = vmatpush2.msra.mxu0 0.0
    %828 = vmatprep.subr.mxu0 0.0
    %829 = vmatpush2.msra.mxu0 0.0
    %830 = vmatprep.subr.mxu0 0.0
    %831 = vmatpush2.msra.mxu0 0.0
    %832 = vmatprep.subr.mxu0 0.0
    %833 = vmatpush2.msra.mxu0 0.0
    %834 = vmatprep.subr.mxu0 0.0
    %835 = vmatpush2.msra.mxu0 0.0
    %836 = vmatprep.subr.mxu0 0.0
    %837 = vmatpush2.msra.mxu0 0.0
    %838 = vmatprep.subr.mxu0 0.0
    %839 = vmatpush2.msra.mxu0 0.0
    %840 = vmatprep.subr.mxu0 0.0
    %841 = vmatpush2.msra.mxu0 0.0
    %842 = vmatprep.subr.mxu0 0.0
    %843 = vmatpush2.msra.mxu0 0.0
    %844 = vmatprep.subr.mxu0 0.0
    %845 = vmatpush2.msra.mxu0 0.0
    %846 = vmatprep.subr.mxu0 0.0
    %847 = vmatpush2.msra.mxu0 0.0
    %848 = vmatprep.subr.mxu0 0.0
    %849 = vmatpush2.msra.mxu0 0.0
    %850 = vmatprep.subr.mxu0 0.0
    %851 = vmatpush2.msra.mxu0 0.0
    %852 = vmatprep.subr.mxu0 0.0
    %853 = vmatpush2.msra.mxu0 0.0
    %854 = vmatprep.subr.mxu0 0.0
    %855 = vmatpush2.msra.mxu0 0.0
    %856 = vmatprep.mubr.f32.mxu0 0.0
    %857 = vmatmul.mubr.f32.gmra.mxu0 %v787
    %v858 = vpop.f32.mrf.mxu0
    %v859 = vadd.f32 0.0, %v858
    %v860 = vpop.f32.mrf.mxu0
    %861 = vdwg.mxu0
    %v862 = vadd.f32 %v704, %v859
    %v863 = vadd.s32 %v233, 4
    %vm864 = vcmp.eq.s32.totalorder %v232, %v863
    %v865 = vsel %vm864, 1, 0
    %v866 = vcvt.s32.f32 %v865
    %v867 = vadd.s32 %v230, 16
    %vm868 = vcmp.eq.s32.totalorder %v232, %v867
    %v869 = vsel %vm868, 1, 0
    %v870 = vcvt.s32.f32 %v869
    %v872 = vsel %vm48, %v866, 0
    %874 = vmatprep.subr.mxu0 0.0
    %875 = vmatpush1.msra.mxu0 0.0
    %876 = vmatprep.subr.mxu0 0.0
    %877 = vmatpush1.msra.mxu0 0.0
    %878 = vmatprep.subr.mxu0 0.0
    %879 = vmatpush1.msra.mxu0 0.0
    %880 = vmatprep.subr.mxu0 0.0
    %881 = vmatpush1.msra.mxu0 0.0
    %882 = vmatprep.subr.mxu0 0.0
    %883 = vmatpush1.msra.mxu0 0.0
    %884 = vmatprep.subr.mxu0 0.0
    %885 = vmatpush1.msra.mxu0 0.0
    %886 = vmatprep.subr.mxu0 0.0
    %887 = vmatpush1.msra.mxu0 0.0
    %888 = vmatprep.subr.mxu0 0.0
    %889 = vmatpush1.msra.mxu0 0.0
    %890 = vmatprep.subr.mxu0 0.0
    %891 = vmatpush1.msra.mxu0 0.0
    %892 = vmatprep.subr.mxu0 0.0
    %893 = vmatpush1.msra.mxu0 0.0
    %894 = vmatprep.subr.mxu0 0.0
    %895 = vmatpush1.msra.mxu0 0.0
    %896 = vmatprep.subr.mxu0 0.0
    %897 = vmatpush1.msra.mxu0 0.0
    %898 = vmatprep.subr.mxu0 0.0
    %899 = vmatpush1.msra.mxu0 0.0
    %900 = vmatprep.subr.mxu0 0.0
    %901 = vmatpush1.msra.mxu0 0.0
    %902 = vmatprep.subr.mxu0 0.0
    %903 = vmatpush1.msra.mxu0 %v225
    %904 = vmatprep.subr.mxu0 0.0
    %905 = vmatpush1.msra.mxu0 %v224
    %906 = vmatprep.subr.mxu0 0.0
    %907 = vmatpush2.msra.mxu0 0.0
    %908 = vmatprep.subr.mxu0 0.0
    %909 = vmatpush2.msra.mxu0 0.0
    %910 = vmatprep.subr.mxu0 0.0
    %911 = vmatpush2.msra.mxu0 0.0
    %912 = vmatprep.subr.mxu0 0.0
    %913 = vmatpush2.msra.mxu0 0.0
    %914 = vmatprep.subr.mxu0 0.0
    %915 = vmatpush2.msra.mxu0 0.0
    %916 = vmatprep.subr.mxu0 0.0
    %917 = vmatpush2.msra.mxu0 0.0
    %918 = vmatprep.subr.mxu0 0.0
    %919 = vmatpush2.msra.mxu0 0.0
    %920 = vmatprep.subr.mxu0 0.0
    %921 = vmatpush2.msra.mxu0 0.0
    %922 = vmatprep.subr.mxu0 0.0
    %923 = vmatpush2.msra.mxu0 0.0
    %924 = vmatprep.subr.mxu0 0.0
    %925 = vmatpush2.msra.mxu0 0.0
    %926 = vmatprep.subr.mxu0 0.0
    %927 = vmatpush2.msra.mxu0 0.0
    %928 = vmatprep.subr.mxu0 0.0
    %929 = vmatpush2.msra.mxu0 0.0
    %930 = vmatprep.subr.mxu0 0.0
    %931 = vmatpush2.msra.mxu0 0.0
    %932 = vmatprep.subr.mxu0 0.0
    %933 = vmatpush2.msra.mxu0 0.0
    %934 = vmatprep.subr.mxu0 0.0
    %935 = vmatpush2.msra.mxu0 0.0
    %936 = vmatprep.subr.mxu0 0.0
    %937 = vmatpush2.msra.mxu0 0.0
    %938 = vmatprep.mubr.f32.mxu0 0.0
    %939 = vmatmul.mubr.f32.gmra.mxu0 %v872
    %v940 = vpop.f32.mrf.mxu0
    %v941 = vadd.f32 0.0, %v940
    %v942 = vpop.f32.mrf.mxu0
    %943 = vdwg.mxu0
    %v945 = vsel %vm226, %v941, 0
    %v948 = vsel %vm397, %v870, 0
    %950 = vmatprep.subr.mxu0 0.0
    %951 = vmatpush1.msra.mxu0 0.0
    %952 = vmatprep.subr.mxu0 0.0
    %953 = vmatpush1.msra.mxu0 0.0
    %954 = vmatprep.subr.mxu0 0.0
    %955 = vmatpush1.msra.mxu0 0.0
    %956 = vmatprep.subr.mxu0 0.0
    %957 = vmatpush1.msra.mxu0 0.0
    %958 = vmatprep.subr.mxu0 0.0
    %959 = vmatpush1.msra.mxu0 0.0
    %960 = vmatprep.subr.mxu0 0.0
    %961 = vmatpush1.msra.mxu0 0.0
    %962 = vmatprep.subr.mxu0 0.0
    %963 = vmatpush1.msra.mxu0 0.0
    %964 = vmatprep.subr.mxu0 0.0
    %965 = vmatpush1.msra.mxu0 0.0
    %966 = vmatprep.subr.mxu0 0.0
    %967 = vmatpush1.msra.mxu0 0.0
    %968 = vmatprep.subr.mxu0 0.0
    %969 = vmatpush1.msra.mxu0 0.0
    %970 = vmatprep.subr.mxu0 0.0
    %971 = vmatpush1.msra.mxu0 0.0
    %972 = vmatprep.subr.mxu0 0.0
    %973 = vmatpush1.msra.mxu0 0.0
    %974 = vmatprep.subr.mxu0 0.0
    %975 = vmatpush1.msra.mxu0 0.0
    %976 = vmatprep.subr.mxu0 0.0
    %977 = vmatpush1.msra.mxu0 0.0
    %978 = vmatprep.subr.mxu0 0.0
    %979 = vmatpush1.msra.mxu0 0.0
    %980 = vmatprep.subr.mxu0 0.0
    %981 = vmatpush1.msra.mxu0 %v948
    %982 = vmatprep.subr.mxu0 0.0
    %983 = vmatpush2.msra.mxu0 0.0
    %984 = vmatprep.subr.mxu0 0.0
    %985 = vmatpush2.msra.mxu0 0.0
    %986 = vmatprep.subr.mxu0 0.0
    %987 = vmatpush2.msra.mxu0 0.0
    %988 = vmatprep.subr.mxu0 0.0
    %989 = vmatpush2.msra.mxu0 0.0
    %990 = vmatprep.subr.mxu0 0.0
    %991 = vmatpush2.msra.mxu0 0.0
    %992 = vmatprep.subr.mxu0 0.0
    %993 = vmatpush2.msra.mxu0 0.0
    %994 = vmatprep.subr.mxu0 0.0
    %995 = vmatpush2.msra.mxu0 0.0
    %996 = vmatprep.subr.mxu0 0.0
    %997 = vmatpush2.msra.mxu0 0.0
    %998 = vmatprep.subr.mxu0 0.0
    %999 = vmatpush2.msra.mxu0 0.0
    %1000 = vmatprep.subr.mxu0 0.0
    %1001 = vmatpush2.msra.mxu0 0.0
    %1002 = vmatprep.subr.mxu0 0.0
    %1003 = vmatpush2.msra.mxu0 0.0
    %1004 = vmatprep.subr.mxu0 0.0
    %1005 = vmatpush2.msra.mxu0 0.0
    %1006 = vmatprep.subr.mxu0 0.0
    %1007 = vmatpush2.msra.mxu0 0.0
    %1008 = vmatprep.subr.mxu0 0.0
    %1009 = vmatpush2.msra.mxu0 0.0
    %1010 = vmatprep.subr.mxu0 0.0
    %1011 = vmatpush2.msra.mxu0 0.0
    %1012 = vmatprep.subr.mxu0 0.0
    %1013 = vmatpush2.msra.mxu0 0.0
    %1014 = vmatprep.mubr.f32.mxu0 0.0
    %1015 = vmatmul.mubr.f32.gmra.mxu0 %v945
    %v1016 = vpop.f32.mrf.mxu0
    %v1017 = vadd.f32 0.0, %v1016
    %v1018 = vpop.f32.mrf.mxu0
    %1019 = vdwg.mxu0
    %v1020 = vadd.f32 %v862, %v1017
    %v1021 = vadd.s32 %v233, 5
    %vm1022 = vcmp.eq.s32.totalorder %v232, %v1021
    %v1023 = vsel %vm1022, 1, 0
    %v1024 = vcvt.s32.f32 %v1023
    %v1025 = vadd.s32 %v230, 20
    %vm1026 = vcmp.eq.s32.totalorder %v232, %v1025
    %v1027 = vsel %vm1026, 1, 0
    %v1028 = vcvt.s32.f32 %v1027
    %v1030 = vsel %vm48, %v1024, 0
    %1032 = vmatprep.subr.mxu0 0.0
    %1033 = vmatpush1.msra.mxu0 0.0
    %1034 = vmatprep.subr.mxu0 0.0
    %1035 = vmatpush1.msra.mxu0 0.0
    %1036 = vmatprep.subr.mxu0 0.0
    %1037 = vmatpush1.msra.mxu0 0.0
    %1038 = vmatprep.subr.mxu0 0.0
    %1039 = vmatpush1.msra.mxu0 0.0
    %1040 = vmatprep.subr.mxu0 0.0
    %1041 = vmatpush1.msra.mxu0 0.0
    %1042 = vmatprep.subr.mxu0 0.0
    %1043 = vmatpush1.msra.mxu0 0.0
    %1044 = vmatprep.subr.mxu0 0.0
    %1045 = vmatpush1.msra.mxu0 0.0
    %1046 = vmatprep.subr.mxu0 0.0
    %1047 = vmatpush1.msra.mxu0 0.0
    %1048 = vmatprep.subr.mxu0 0.0
    %1049 = vmatpush1.msra.mxu0 0.0
    %1050 = vmatprep.subr.mxu0 0.0
    %1051 = vmatpush1.msra.mxu0 0.0
    %1052 = vmatprep.subr.mxu0 0.0
    %1053 = vmatpush1.msra.mxu0 0.0
    %1054 = vmatprep.subr.mxu0 0.0
    %1055 = vmatpush1.msra.mxu0 0.0
    %1056 = vmatprep.subr.mxu0 0.0
    %1057 = vmatpush1.msra.mxu0 0.0
    %1058 = vmatprep.subr.mxu0 0.0
    %1059 = vmatpush1.msra.mxu0 0.0
    %1060 = vmatprep.subr.mxu0 0.0
    %1061 = vmatpush1.msra.mxu0 %v225
    %1062 = vmatprep.subr.mxu0 0.0
    %1063 = vmatpush1.msra.mxu0 %v224
    %1064 = vmatprep.subr.mxu0 0.0
    %1065 = vmatpush2.msra.mxu0 0.0
    %1066 = vmatprep.subr.mxu0 0.0
    %1067 = vmatpush2.msra.mxu0 0.0
    %1068 = vmatprep.subr.mxu0 0.0
    %1069 = vmatpush2.msra.mxu0 0.0
    %1070 = vmatprep.subr.mxu0 0.0
    %1071 = vmatpush2.msra.mxu0 0.0
    %1072 = vmatprep.subr.mxu0 0.0
    %1073 = vmatpush2.msra.mxu0 0.0
    %1074 = vmatprep.subr.mxu0 0.0
    %1075 = vmatpush2.msra.mxu0 0.0
    %1076 = vmatprep.subr.mxu0 0.0
    %1077 = vmatpush2.msra.mxu0 0.0
    %1078 = vmatprep.subr.mxu0 0.0
    %1079 = vmatpush2.msra.mxu0 0.0
    %1080 = vmatprep.subr.mxu0 0.0
    %1081 = vmatpush2.msra.mxu0 0.0
    %1082 = vmatprep.subr.mxu0 0.0
    %1083 = vmatpush2.msra.mxu0 0.0
    %1084 = vmatprep.subr.mxu0 0.0
    %1085 = vmatpush2.msra.mxu0 0.0
    %1086 = vmatprep.subr.mxu0 0.0
    %1087 = vmatpush2.msra.mxu0 0.0
    %1088 = vmatprep.subr.mxu0 0.0
    %1089 = vmatpush2.msra.mxu0 0.0
    %1090 = vmatprep.subr.mxu0 0.0
    %1091 = vmatpush2.msra.mxu0 0.0
    %1092 = vmatprep.subr.mxu0 0.0
    %1093 = vmatpush2.msra.mxu0 0.0
    %1094 = vmatprep.subr.mxu0 0.0
    %1095 = vmatpush2.msra.mxu0 0.0
    %1096 = vmatprep.mubr.f32.mxu0 0.0
    %1097 = vmatmul.mubr.f32.gmra.mxu0 %v1030
    %v1098 = vpop.f32.mrf.mxu0
    %v1099 = vadd.f32 0.0, %v1098
    %v1100 = vpop.f32.mrf.mxu0
    %1101 = vdwg.mxu0
    %v1103 = vsel %vm226, %v1099, 0
    %v1106 = vsel %vm397, %v1028, 0
    %1108 = vmatprep.subr.mxu0 0.0
    %1109 = vmatpush1.msra.mxu0 0.0
    %1110 = vmatprep.subr.mxu0 0.0
    %1111 = vmatpush1.msra.mxu0 0.0
    %1112 = vmatprep.subr.mxu0 0.0
    %1113 = vmatpush1.msra.mxu0 0.0
    %1114 = vmatprep.subr.mxu0 0.0
    %1115 = vmatpush1.msra.mxu0 0.0
    %1116 = vmatprep.subr.mxu0 0.0
    %1117 = vmatpush1.msra.mxu0 0.0
    %1118 = vmatprep.subr.mxu0 0.0
    %1119 = vmatpush1.msra.mxu0 0.0
    %1120 = vmatprep.subr.mxu0 0.0
    %1121 = vmatpush1.msra.mxu0 0.0
    %1122 = vmatprep.subr.mxu0 0.0
    %1123 = vmatpush1.msra.mxu0 0.0
    %1124 = vmatprep.subr.mxu0 0.0
    %1125 = vmatpush1.msra.mxu0 0.0
    %1126 = vmatprep.subr.mxu0 0.0
    %1127 = vmatpush1.msra.mxu0 0.0
    %1128 = vmatprep.subr.mxu0 0.0
    %1129 = vmatpush1.msra.mxu0 0.0
    %1130 = vmatprep.subr.mxu0 0.0
    %1131 = vmatpush1.msra.mxu0 0.0
    %1132 = vmatprep.subr.mxu0 0.0
    %1133 = vmatpush1.msra.mxu0 0.0
    %1134 = vmatprep.subr.mxu0 0.0
    %1135 = vmatpush1.msra.mxu0 0.0
    %1136 = vmatprep.subr.mxu0 0.0
    %1137 = vmatpush1.msra.mxu0 0.0
    %1138 = vmatprep.subr.mxu0 0.0
    %1139 = vmatpush1.msra.mxu0 %v1106
    %1140 = vmatprep.subr.mxu0 0.0
    %1141 = vmatpush2.msra.mxu0 0.0
    %1142 = vmatprep.subr.mxu0 0.0
    %1143 = vmatpush2.msra.mxu0 0.0
    %1144 = vmatprep.subr.mxu0 0.0
    %1145 = vmatpush2.msra.mxu0 0.0
    %1146 = vmatprep.subr.mxu0 0.0
    %1147 = vmatpush2.msra.mxu0 0.0
    %1148 = vmatprep.subr.mxu0 0.0
    %1149 = vmatpush2.msra.mxu0 0.0
    %1150 = vmatprep.subr.mxu0 0.0
    %1151 = vmatpush2.msra.mxu0 0.0
    %1152 = vmatprep.subr.mxu0 0.0
    %1153 = vmatpush2.msra.mxu0 0.0
    %1154 = vmatprep.subr.mxu0 0.0
    %1155 = vmatpush2.msra.mxu0 0.0
    %1156 = vmatprep.subr.mxu0 0.0
    %1157 = vmatpush2.msra.mxu0 0.0
    %1158 = vmatprep.subr.mxu0 0.0
    %1159 = vmatpush2.msra.mxu0 0.0
    %1160 = vmatprep.subr.mxu0 0.0
    %1161 = vmatpush2.msra.mxu0 0.0
    %1162 = vmatprep.subr.mxu0 0.0
    %1163 = vmatpush2.msra.mxu0 0.0
    %1164 = vmatprep.subr.mxu0 0.0
    %1165 = vmatpush2.msra.mxu0 0.0
    %1166 = vmatprep.subr.mxu0 0.0
    %1167 = vmatpush2.msra.mxu0 0.0
    %1168 = vmatprep.subr.mxu0 0.0
    %1169 = vmatpush2.msra.mxu0 0.0
    %1170 = vmatprep.subr.mxu0 0.0
    %1171 = vmatpush2.msra.mxu0 0.0
    %1172 = vmatprep.mubr.f32.mxu0 0.0
    %1173 = vmatmul.mubr.f32.gmra.mxu0 %v1103
    %v1174 = vpop.f32.mrf.mxu0
    %v1175 = vadd.f32 0.0, %v1174
    %v1176 = vpop.f32.mrf.mxu0
    %1177 = vdwg.mxu0
    %v1178 = vadd.f32 %v1020, %v1175
    %v1179 = vadd.s32 %v233, 6
    %vm1180 = vcmp.eq.s32.totalorder %v232, %v1179
    %v1181 = vsel %vm1180, 1, 0
    %v1182 = vcvt.s32.f32 %v1181
    %v1183 = vadd.s32 %v230, 24
    %vm1184 = vcmp.eq.s32.totalorder %v232, %v1183
    %v1185 = vsel %vm1184, 1, 0
    %v1186 = vcvt.s32.f32 %v1185
    %v1188 = vsel %vm48, %v1182, 0
    %1190 = vmatprep.subr.mxu0 0.0
    %1191 = vmatpush1.msra.mxu0 0.0
    %1192 = vmatprep.subr.mxu0 0.0
    %1193 = vmatpush1.msra.mxu0 0.0
    %1194 = vmatprep.subr.mxu0 0.0
    %1195 = vmatpush1.msra.mxu0 0.0
    %1196 = vmatprep.subr.mxu0 0.0
    %1197 = vmatpush1.msra.mxu0 0.0
    %1198 = vmatprep.subr.mxu0 0.0
    %1199 = vmatpush1.msra.mxu0 0.0
    %1200 = vmatprep.subr.mxu0 0.0
    %1201 = vmatpush1.msra.mxu0 0.0
    %1202 = vmatprep.subr.mxu0 0.0
    %1203 = vmatpush1.msra.mxu0 0.0
    %1204 = vmatprep.subr.mxu0 0.0
    %1205 = vmatpush1.msra.mxu0 0.0
    %1206 = vmatprep.subr.mxu0 0.0
    %1207 = vmatpush1.msra.mxu0 0.0
    %1208 = vmatprep.subr.mxu0 0.0
    %1209 = vmatpush1.msra.mxu0 0.0
    %1210 = vmatprep.subr.mxu0 0.0
    %1211 = vmatpush1.msra.mxu0 0.0
    %1212 = vmatprep.subr.mxu0 0.0
    %1213 = vmatpush1.msra.mxu0 0.0
    %1214 = vmatprep.subr.mxu0 0.0
    %1215 = vmatpush1.msra.mxu0 0.0
    %1216 = vmatprep.subr.mxu0 0.0
    %1217 = vmatpush1.msra.mxu0 0.0
    %1218 = vmatprep.subr.mxu0 0.0
    %1219 = vmatpush1.msra.mxu0 %v225
    %1220 = vmatprep.subr.mxu0 0.0
    %1221 = vmatpush1.msra.mxu0 %v224
    %1222 = vmatprep.subr.mxu0 0.0
    %1223 = vmatpush2.msra.mxu0 0.0
    %1224 = vmatprep.subr.mxu0 0.0
    %1225 = vmatpush2.msra.mxu0 0.0
    %1226 = vmatprep.subr.mxu0 0.0
    %1227 = vmatpush2.msra.mxu0 0.0
    %1228 = vmatprep.subr.mxu0 0.0
    %1229 = vmatpush2.msra.mxu0 0.0
    %1230 = vmatprep.subr.mxu0 0.0
    %1231 = vmatpush2.msra.mxu0 0.0
    %1232 = vmatprep.subr.mxu0 0.0
    %1233 = vmatpush2.msra.mxu0 0.0
    %1234 = vmatprep.subr.mxu0 0.0
    %1235 = vmatpush2.msra.mxu0 0.0
    %1236 = vmatprep.subr.mxu0 0.0
    %1237 = vmatpush2.msra.mxu0 0.0
    %1238 = vmatprep.subr.mxu0 0.0
    %1239 = vmatpush2.msra.mxu0 0.0
    %1240 = vmatprep.subr.mxu0 0.0
    %1241 = vmatpush2.msra.mxu0 0.0
    %1242 = vmatprep.subr.mxu0 0.0
    %1243 = vmatpush2.msra.mxu0 0.0
    %1244 = vmatprep.subr.mxu0 0.0
    %1245 = vmatpush2.msra.mxu0 0.0
    %1246 = vmatprep.subr.mxu0 0.0
    %1247 = vmatpush2.msra.mxu0 0.0
    %1248 = vmatprep.subr.mxu0 0.0
    %1249 = vmatpush2.msra.mxu0 0.0
    %1250 = vmatprep.subr.mxu0 0.0
    %1251 = vmatpush2.msra.mxu0 0.0
    %1252 = vmatprep.subr.mxu0 0.0
    %1253 = vmatpush2.msra.mxu0 0.0
    %1254 = vmatprep.mubr.f32.mxu0 0.0
    %1255 = vmatmul.mubr.f32.gmra.mxu0 %v1188
    %v1256 = vpop.f32.mrf.mxu0
    %v1257 = vadd.f32 0.0, %v1256
    %v1258 = vpop.f32.mrf.mxu0
    %1259 = vdwg.mxu0
    %v1261 = vsel %vm226, %v1257, 0
    %v1264 = vsel %vm397, %v1186, 0
    %1266 = vmatprep.subr.mxu0 0.0
    %1267 = vmatpush1.msra.mxu0 0.0
    %1268 = vmatprep.subr.mxu0 0.0
    %1269 = vmatpush1.msra.mxu0 0.0
    %1270 = vmatprep.subr.mxu0 0.0
    %1271 = vmatpush1.msra.mxu0 0.0
    %1272 = vmatprep.subr.mxu0 0.0
    %1273 = vmatpush1.msra.mxu0 0.0
    %1274 = vmatprep.subr.mxu0 0.0
    %1275 = vmatpush1.msra.mxu0 0.0
    %1276 = vmatprep.subr.mxu0 0.0
    %1277 = vmatpush1.msra.mxu0 0.0
    %1278 = vmatprep.subr.mxu0 0.0
    %1279 = vmatpush1.msra.mxu0 0.0
    %1280 = vmatprep.subr.mxu0 0.0
    %1281 = vmatpush1.msra.mxu0 0.0
    %1282 = vmatprep.subr.mxu0 0.0
    %1283 = vmatpush1.msra.mxu0 0.0
    %1284 = vmatprep.subr.mxu0 0.0
    %1285 = vmatpush1.msra.mxu0 0.0
    %1286 = vmatprep.subr.mxu0 0.0
    %1287 = vmatpush1.msra.mxu0 0.0
    %1288 = vmatprep.subr.mxu0 0.0
    %1289 = vmatpush1.msra.mxu0 0.0
    %1290 = vmatprep.subr.mxu0 0.0
    %1291 = vmatpush1.msra.mxu0 0.0
    %1292 = vmatprep.subr.mxu0 0.0
    %1293 = vmatpush1.msra.mxu0 0.0
    %1294 = vmatprep.subr.mxu0 0.0
    %1295 = vmatpush1.msra.mxu0 0.0
    %1296 = vmatprep.subr.mxu0 0.0
    %1297 = vmatpush1.msra.mxu0 %v1264
    %1298 = vmatprep.subr.mxu0 0.0
    %1299 = vmatpush2.msra.mxu0 0.0
    %1300 = vmatprep.subr.mxu0 0.0
    %1301 = vmatpush2.msra.mxu0 0.0
    %1302 = vmatprep.subr.mxu0 0.0
    %1303 = vmatpush2.msra.mxu0 0.0
    %1304 = vmatprep.subr.mxu0 0.0
    %1305 = vmatpush2.msra.mxu0 0.0
    %1306 = vmatprep.subr.mxu0 0.0
    %1307 = vmatpush2.msra.mxu0 0.0
    %1308 = vmatprep.subr.mxu0 0.0
    %1309 = vmatpush2.msra.mxu0 0.0
    %1310 = vmatprep.subr.mxu0 0.0
    %1311 = vmatpush2.msra.mxu0 0.0
    %1312 = vmatprep.subr.mxu0 0.0
    %1313 = vmatpush2.msra.mxu0 0.0
    %1314 = vmatprep.subr.mxu0 0.0
    %1315 = vmatpush2.msra.mxu0 0.0
    %1316 = vmatprep.subr.mxu0 0.0
    %1317 = vmatpush2.msra.mxu0 0.0
    %1318 = vmatprep.subr.mxu0 0.0
    %1319 = vmatpush2.msra.mxu0 0.0
    %1320 = vmatprep.subr.mxu0 0.0
    %1321 = vmatpush2.msra.mxu0 0.0
    %1322 = vmatprep.subr.mxu0 0.0
    %1323 = vmatpush2.msra.mxu0 0.0
    %1324 = vmatprep.subr.mxu0 0.0
    %1325 = vmatpush2.msra.mxu0 0.0
    %1326 = vmatprep.subr.mxu0 0.0
    %1327 = vmatpush2.msra.mxu0 0.0
    %1328 = vmatprep.subr.mxu0 0.0
    %1329 = vmatpush2.msra.mxu0 0.0
    %1330 = vmatprep.mubr.f32.mxu0 0.0
    %1331 = vmatmul.mubr.f32.gmra.mxu0 %v1261
    %v1332 = vpop.f32.mrf.mxu0
    %v1333 = vadd.f32 0.0, %v1332
    %v1334 = vpop.f32.mrf.mxu0
    %1335 = vdwg.mxu0
    %v1336 = vadd.f32 %v1178, %v1333
    %v1337 = vadd.s32 %v233, 7
    %vm1338 = vcmp.eq.s32.totalorder %v232, %v1337
    %v1339 = vsel %vm1338, 1, 0
    %v1340 = vcvt.s32.f32 %v1339
    %v1341 = vadd.s32 %v230, 28
    %vm1342 = vcmp.eq.s32.totalorder %v232, %v1341
    %v1343 = vsel %vm1342, 1, 0
    %v1344 = vcvt.s32.f32 %v1343
    %v1346 = vsel %vm48, %v1340, 0
    %1348 = vmatprep.subr.mxu0 0.0
    %1349 = vmatpush1.msra.mxu0 0.0
    %1350 = vmatprep.subr.mxu0 0.0
    %1351 = vmatpush1.msra.mxu0 0.0
    %1352 = vmatprep.subr.mxu0 0.0
    %1353 = vmatpush1.msra.mxu0 0.0
    %1354 = vmatprep.subr.mxu0 0.0
    %1355 = vmatpush1.msra.mxu0 0.0
    %1356 = vmatprep.subr.mxu0 0.0
    %1357 = vmatpush1.msra.mxu0 0.0
    %1358 = vmatprep.subr.mxu0 0.0
    %1359 = vmatpush1.msra.mxu0 0.0
    %1360 = vmatprep.subr.mxu0 0.0
    %1361 = vmatpush1.msra.mxu0 0.0
    %1362 = vmatprep.subr.mxu0 0.0
    %1363 = vmatpush1.msra.mxu0 0.0
    %1364 = vmatprep.subr.mxu0 0.0
    %1365 = vmatpush1.msra.mxu0 0.0
    %1366 = vmatprep.subr.mxu0 0.0
    %1367 = vmatpush1.msra.mxu0 0.0
    %1368 = vmatprep.subr.mxu0 0.0
    %1369 = vmatpush1.msra.mxu0 0.0
    %1370 = vmatprep.subr.mxu0 0.0
    %1371 = vmatpush1.msra.mxu0 0.0
    %1372 = vmatprep.subr.mxu0 0.0
    %1373 = vmatpush1.msra.mxu0 0.0
    %1374 = vmatprep.subr.mxu0 0.0
    %1375 = vmatpush1.msra.mxu0 0.0
    %1376 = vmatprep.subr.mxu0 0.0
    %1377 = vmatpush1.msra.mxu0 %v225
    %1378 = vmatprep.subr.mxu0 0.0
    %1379 = vmatpush1.msra.mxu0 %v224
    %1380 = vmatprep.subr.mxu0 0.0
    %1381 = vmatpush2.msra.mxu0 0.0
    %1382 = vmatprep.subr.mxu0 0.0
    %1383 = vmatpush2.msra.mxu0 0.0
    %1384 = vmatprep.subr.mxu0 0.0
    %1385 = vmatpush2.msra.mxu0 0.0
    %1386 = vmatprep.subr.mxu0 0.0
    %1387 = vmatpush2.msra.mxu0 0.0
    %1388 = vmatprep.subr.mxu0 0.0
    %1389 = vmatpush2.msra.mxu0 0.0
    %1390 = vmatprep.subr.mxu0 0.0
    %1391 = vmatpush2.msra.mxu0 0.0
    %1392 = vmatprep.subr.mxu0 0.0
    %1393 = vmatpush2.msra.mxu0 0.0
    %1394 = vmatprep.subr.mxu0 0.0
    %1395 = vmatpush2.msra.mxu0 0.0
    %1396 = vmatprep.subr.mxu0 0.0
    %1397 = vmatpush2.msra.mxu0 0.0
    %1398 = vmatprep.subr.mxu0 0.0
    %1399 = vmatpush2.msra.mxu0 0.0
    %1400 = vmatprep.subr.mxu0 0.0
    %1401 = vmatpush2.msra.mxu0 0.0
    %1402 = vmatprep.subr.mxu0 0.0
    %1403 = vmatpush2.msra.mxu0 0.0
    %1404 = vmatprep.subr.mxu0 0.0
    %1405 = vmatpush2.msra.mxu0 0.0
    %1406 = vmatprep.subr.mxu0 0.0
    %1407 = vmatpush2.msra.mxu0 0.0
    %1408 = vmatprep.subr.mxu0 0.0
    %1409 = vmatpush2.msra.mxu0 0.0
    %1410 = vmatprep.subr.mxu0 0.0
    %1411 = vmatpush2.msra.mxu0 0.0
    %1412 = vmatprep.mubr.f32.mxu0 0.0
    %1413 = vmatmul.mubr.f32.gmra.mxu0 %v1346
    %v1414 = vpop.f32.mrf.mxu0
    %v1415 = vadd.f32 0.0, %v1414
    %v1416 = vpop.f32.mrf.mxu0
    %1417 = vdwg.mxu0
    %v1419 = vsel %vm226, %v1415, 0
    %v1422 = vsel %vm397, %v1344, 0
    %1424 = vmatprep.subr.mxu0 0.0
    %1425 = vmatpush1.msra.mxu0 0.0
    %1426 = vmatprep.subr.mxu0 0.0
    %1427 = vmatpush1.msra.mxu0 0.0
    %1428 = vmatprep.subr.mxu0 0.0
    %1429 = vmatpush1.msra.mxu0 0.0
    %1430 = vmatprep.subr.mxu0 0.0
    %1431 = vmatpush1.msra.mxu0 0.0
    %1432 = vmatprep.subr.mxu0 0.0
    %1433 = vmatpush1.msra.mxu0 0.0
    %1434 = vmatprep.subr.mxu0 0.0
    %1435 = vmatpush1.msra.mxu0 0.0
    %1436 = vmatprep.subr.mxu0 0.0
    %1437 = vmatpush1.msra.mxu0 0.0
    %1438 = vmatprep.subr.mxu0 0.0
    %1439 = vmatpush1.msra.mxu0 0.0
    %1440 = vmatprep.subr.mxu0 0.0
    %1441 = vmatpush1.msra.mxu0 0.0
    %1442 = vmatprep.subr.mxu0 0.0
    %1443 = vmatpush1.msra.mxu0 0.0
    %1444 = vmatprep.subr.mxu0 0.0
    %1445 = vmatpush1.msra.mxu0 0.0
    %1446 = vmatprep.subr.mxu0 0.0
    %1447 = vmatpush1.msra.mxu0 0.0
    %1448 = vmatprep.subr.mxu0 0.0
    %1449 = vmatpush1.msra.mxu0 0.0
    %1450 = vmatprep.subr.mxu0 0.0
    %1451 = vmatpush1.msra.mxu0 0.0
    %1452 = vmatprep.subr.mxu0 0.0
    %1453 = vmatpush1.msra.mxu0 0.0
    %1454 = vmatprep.subr.mxu0 0.0
    %1455 = vmatpush1.msra.mxu0 %v1422
    %1456 = vmatprep.subr.mxu0 0.0
    %1457 = vmatpush2.msra.mxu0 0.0
    %1458 = vmatprep.subr.mxu0 0.0
    %1459 = vmatpush2.msra.mxu0 0.0
    %1460 = vmatprep.subr.mxu0 0.0
    %1461 = vmatpush2.msra.mxu0 0.0
    %1462 = vmatprep.subr.mxu0 0.0
    %1463 = vmatpush2.msra.mxu0 0.0
    %1464 = vmatprep.subr.mxu0 0.0
    %1465 = vmatpush2.msra.mxu0 0.0
    %1466 = vmatprep.subr.mxu0 0.0
    %1467 = vmatpush2.msra.mxu0 0.0
    %1468 = vmatprep.subr.mxu0 0.0
    %1469 = vmatpush2.msra.mxu0 0.0
    %1470 = vmatprep.subr.mxu0 0.0
    %1471 = vmatpush2.msra.mxu0 0.0
    %1472 = vmatprep.subr.mxu0 0.0
    %1473 = vmatpush2.msra.mxu0 0.0
    %1474 = vmatprep.subr.mxu0 0.0
    %1475 = vmatpush2.msra.mxu0 0.0
    %1476 = vmatprep.subr.mxu0 0.0
    %1477 = vmatpush2.msra.mxu0 0.0
    %1478 = vmatprep.subr.mxu0 0.0
    %1479 = vmatpush2.msra.mxu0 0.0
    %1480 = vmatprep.subr.mxu0 0.0
    %1481 = vmatpush2.msra.mxu0 0.0
    %1482 = vmatprep.subr.mxu0 0.0
    %1483 = vmatpush2.msra.mxu0 0.0
    %1484 = vmatprep.subr.mxu0 0.0
    %1485 = vmatpush2.msra.mxu0 0.0
    %1486 = vmatprep.subr.mxu0 0.0
    %1487 = vmatpush2.msra.mxu0 0.0
    %1488 = vmatprep.mubr.f32.mxu0 0.0
    %1489 = vmatmul.mubr.f32.gmra.mxu0 %v1419
    %v1490 = vpop.f32.mrf.mxu0
    %v1491 = vadd.f32 0.0, %v1490
    %v1492 = vpop.f32.mrf.mxu0
    %1493 = vdwg.mxu0
    %v1494 = vadd.f32 %v1336, %v1491
    %v1495 = vmul.u32 %v232, 8
    %v1496 = vadd.s32 %v1495, 4
    %vm1497 = vcmp.eq.s32.totalorder %v230, %v1496
    %vm1498 = vcmp.eq.s32.totalorder %v551, %v1496
    %vm1499 = vcmp.eq.s32.totalorder %v867, %v1496
    %vm1500 = vcmp.eq.s32.totalorder %v1183, %v1496
    %v1501 = vsel %vm1497, 1, 0
    %v1502 = vsel %vm1498, 1, 0
    %v1503 = vsel %vm1499, 1, 0
    %v1504 = vsel %vm1500, 1, 0
    %v1505 = vcvt.s32.f32 %v1501
    %v1506 = vcvt.s32.f32 %v1502
    %v1507 = vcvt.s32.f32 %v1503
    %v1508 = vcvt.s32.f32 %v1504
    %vm1509 = vcmask 261120
    %v1511 = vsel %vm1509, %v1494, 0
    %1513 = vmatprep.subr.mxu0 0.0
    %1514 = vmatpush1.msra.mxu0 0.0
    %1515 = vmatprep.subr.mxu0 0.0
    %1516 = vmatpush1.msra.mxu0 0.0
    %1517 = vmatprep.subr.mxu0 0.0
    %1518 = vmatpush1.msra.mxu0 0.0
    %1519 = vmatprep.subr.mxu0 0.0
    %1520 = vmatpush1.msra.mxu0 0.0
    %1521 = vmatprep.subr.mxu0 0.0
    %1522 = vmatpush1.msra.mxu0 0.0
    %1523 = vmatprep.subr.mxu0 0.0
    %1524 = vmatpush1.msra.mxu0 0.0
    %1525 = vmatprep.subr.mxu0 0.0
    %1526 = vmatpush1.msra.mxu0 0.0
    %1527 = vmatprep.subr.mxu0 0.0
    %1528 = vmatpush1.msra.mxu0 0.0
    %1529 = vmatprep.subr.mxu0 0.0
    %1530 = vmatpush1.msra.mxu0 0.0
    %1531 = vmatprep.subr.mxu0 0.0
    %1532 = vmatpush1.msra.mxu0 0.0
    %1533 = vmatprep.subr.mxu0 0.0
    %1534 = vmatpush1.msra.mxu0 0.0
    %1535 = vmatprep.subr.mxu0 0.0
    %1536 = vmatpush1.msra.mxu0 0.0
    %1537 = vmatprep.subr.mxu0 0.0
    %1538 = vmatpush1.msra.mxu0 %v1508
    %1539 = vmatprep.subr.mxu0 0.0
    %1540 = vmatpush1.msra.mxu0 %v1507
    %1541 = vmatprep.subr.mxu0 0.0
    %1542 = vmatpush1.msra.mxu0 %v1506
    %1543 = vmatprep.subr.mxu0 0.0
    %1544 = vmatpush1.msra.mxu0 %v1505
    %1545 = vmatprep.subr.mxu0 0.0
    %1546 = vmatpush2.msra.mxu0 0.0
    %1547 = vmatprep.subr.mxu0 0.0
    %1548 = vmatpush2.msra.mxu0 0.0
    %1549 = vmatprep.subr.mxu0 0.0
    %1550 = vmatpush2.msra.mxu0 0.0
    %1551 = vmatprep.subr.mxu0 0.0
    %1552 = vmatpush2.msra.mxu0 0.0
    %1553 = vmatprep.subr.mxu0 0.0
    %1554 = vmatpush2.msra.mxu0 0.0
    %1555 = vmatprep.subr.mxu0 0.0
    %1556 = vmatpush2.msra.mxu0 0.0
    %1557 = vmatprep.subr.mxu0 0.0
    %1558 = vmatpush2.msra.mxu0 0.0
    %1559 = vmatprep.subr.mxu0 0.0
    %1560 = vmatpush2.msra.mxu0 0.0
    %1561 = vmatprep.subr.mxu0 0.0
    %1562 = vmatpush2.msra.mxu0 0.0
    %1563 = vmatprep.subr.mxu0 0.0
    %1564 = vmatpush2.msra.mxu0 0.0
    %1565 = vmatprep.subr.mxu0 0.0
    %1566 = vmatpush2.msra.mxu0 0.0
    %1567 = vmatprep.subr.mxu0 0.0
    %1568 = vmatpush2.msra.mxu0 0.0
    %1569 = vmatprep.subr.mxu0 0.0
    %1570 = vmatpush2.msra.mxu0 0.0
    %1571 = vmatprep.subr.mxu0 0.0
    %1572 = vmatpush2.msra.mxu0 0.0
    %1573 = vmatprep.subr.mxu0 0.0
    %1574 = vmatpush2.msra.mxu0 0.0
    %1575 = vmatprep.subr.mxu0 0.0
    %1576 = vmatpush2.msra.mxu0 0.0
    %1577 = vmatprep.mubr.f32.mxu0 0.0
    %1578 = vmatmul.mubr.f32.gmra.mxu0 %v1511
    %v1579 = vpop.f32.mrf.mxu0
    %v1580 = vadd.f32 0.0, %v1579
    %v1581 = vpop.f32.mrf.mxu0
    %1582 = vdwg.mxu0
    %vm1583 = vcmask 25600
    %v1584 = vsel %vm1583, %v1580, -inf
    %1585 = vmax.xlane.f32.xlu0 %v1584
    %v1586 = vpop.xlane.xlu0 %1585
    %vm1587 = vcmp.eq.f32.partialorder %v1580, %v1586
    %v1588 = vsel %vm1587, %v232, 4
    %v1589 = vsel %vm1583, %v1588, 2147483647
    %v1590 = vand.u32 %v1589, 65535
    %v1591 = vshra.s32 %v1589, 16
    %v1592 = vcvt.s32.f32 %v1590
    %v1593 = vcvt.s32.f32 %v1591
    %1594 = vmin.xlane.f32.xlu0 %v1593
    %v1595 = vpop.xlane.xlu0 %1594
    %vm1596 = vcmp.eq.f32.partialorder %v1593, %v1595
    %v1597 = vsel %vm1596, %v1592, inf
    %1598 = vmin.xlane.f32.xlu0 %v1597
    %v1599 = vpop.xlane.xlu0 %1598
    %v1600 = vcvt.f32.s32 %v1599
    %v1601 = vcvt.f32.s32 %v1595
    %v1602 = vshll.u32 %v1601, 16
    %v1603 = vadd.s32 %v1602, %v1600
    %vm1604 = vcmp.eq.s32.totalorder %v232, %v1603
    %v1605 = vsel %vm1604, 1, 0
    %v1606 = vcvt.s32.f32 %v1605
    %1608 = vset.pattern.permute.xlu0 0
    %1609 = vperm.xlu0 %1608, %v1606
    %v1610 = vpop.permute.xlu0 %1609
    %v1612 = vmul.f32 %v1610, %v1494
    %v1613 = vadd.f32 %v1612, 0.0
    %1614 = vset.pattern.permute.xlu0 1
    %1615 = vperm.xlu0 %1614, %v1606
    %v1616 = vpop.permute.xlu0 %1615
    %v1618 = vmul.f32 %v1616, %v1494
    %1620 = vrot.lane.b32.xlu0 %v1618, 120
    %v1621 = vpop.permute.xlu0 %1620
    %v1623 = vadd.f32 %v1613, %v1621
    %1624 = vset.pattern.permute.xlu0 2
    %1625 = vperm.xlu0 %1624, %v1606
    %v1626 = vpop.permute.xlu0 %1625
    %v1628 = vmul.f32 %v1626, %v1494
    %1630 = vrot.lane.b32.xlu0 %v1628, 112
    %v1631 = vpop.permute.xlu0 %1630
    %v1633 = vadd.f32 %v1623, %v1631
    %1634 = vset.pattern.permute.xlu0 3
    %1635 = vperm.xlu0 %1634, %v1606
    %v1636 = vpop.permute.xlu0 %1635
    %v1638 = vmul.f32 %v1636, %v1494
    %1640 = vrot.lane.b32.xlu0 %v1638, 104
    %v1641 = vpop.permute.xlu0 %1640
    %v1643 = vadd.f32 %v1633, %v1641
    %vm1644 = vcmask 58368
    %1645 = vst.msk [vmem:[#allocation5] sm:$0x3] %vm1644, %v1643
    // Predicated region
    $region26: #{expectile_dqn_forward.1} parent=1 // pred_check
      _
    $region27: #{expectile_dqn_forward.1} parent=1 // pred_check_branch
      %1647 = sbr.rel (0) target = $region29
    $region28: #{expectile_dqn_forward.1} parent=1 // pred_region
      _
    $region29: #{expectile_dqn_forward.1} parent=1 // pred_fallthru
      _
    // Predicated region
    $region30: #{expectile_dqn_forward.1} parent=1 // pred_check
      _
    $region31: #{expectile_dqn_forward.1} parent=1 // pred_check_branch
      %1649 = sbr.rel (0) target = $region33
    $region32: #{expectile_dqn_forward.1} parent=1 // pred_region
      %s1651 = ssub.s32 32, 32
      %1652 = vsyncadd [#allocation4], %s1651
      %s1654 = sshll.u32 [#allocation5], 4
      %s1655 = int_to_ptr.vmem [resolvable:$true] %s1654
      %1657 = dma.vmem_to_hbm [thread:$0]  %s1655, 32, %s6, [#allocation4]
    $region33: #{expectile_dqn_forward.1} parent=1 // pred_fallthru
      _
    // Predicated region
    $region34: #{expectile_dqn_forward.1} parent=1 // pred_check
      _
    $region35: #{expectile_dqn_forward.1} parent=1 // pred_check_branch
      %1659 = sbr.rel (0) target = $region37
    $region36: #{expectile_dqn_forward.1} parent=1 // pred_region
      _
    $region37: #{expectile_dqn_forward.1} parent=1 // pred_fallthru
      _
    // Predicated region
    $region38: #{expectile_dqn_forward.1} parent=1 // pred_check
      _
    $region39: #{expectile_dqn_forward.1} parent=1 // pred_check_branch
      %1661 = sbr.rel (0) target = $region41
    $region40: #{expectile_dqn_forward.1} parent=1 // pred_region
      %1662 = dma.done [#allocation4], 32
    $region41: #{expectile_dqn_forward.1} parent=1 // pred_fallthru
      _
    %1663 = vsyncpa [#allocation3], 1
    %1664 = vsyncpa [#allocation4], 1

</llo_original>
